<compile_context>
chip_gen: v7x
topology: tpu7x:2x2x1
jax: 0.10.0
libtpu: 0.0.40
codegen_flags: <defaults>
</compile_context>

<pallas_src>
import math

import jax
import jax.numpy as jnp
from jax import lax
from jax.experimental import pallas as pl
from jax.experimental.pallas import tpu as pltpu  # noqa: F401  (kept for interpret-mode debugging)

B, T, D, H = 2, 8, 32, 4        # batch, seq, d_model, n_head
DK = D // H
N = B * T                       # batch folded into rows
HN = H * N                      # head-stacked rows
EPS = 1e-5                      # PyTorch LayerNorm default eps


def _layer_norm(x, gamma, beta):
    mean = jnp.mean(x, axis=-1, keepdims=True)
    var = jnp.mean((x - mean) ** 2, axis=-1, keepdims=True)
    return (x - mean) * lax.rsqrt(var + EPS) * gamma + beta


def mha_kernel(x_ref, pblk_ref, par_ref, wqkv_ref, wout_ref, out_ref):
    x = x_ref[...]                      # (N, D)   rows = b*T + t
    par = par_ref[...]                  # (7, D)   packed small params
    g0, b0 = par[0:1, :], par[1:2, :]
    g1, b1 = par[2:3, :], par[3:4, :]
    b_out = par[4:5, :]
    bias_u = par[5:6, :]                # pos_bias_u flattened to (1, D)
    bias_v = par[6:7, :]                # pos_bias_v flattened to (1, D)

    # MHAModule.layer_norm, then RelPositionMultiHeadedAttention.layer_norm
    h = _layer_norm(x, g0, b0)
    hn = _layer_norm(h, g1, b1)

    # Fused QKV projection (single MXU op).
    qkv = jnp.dot(hn, wqkv_ref[...], preferred_element_type=jnp.float32)   # (N, 3D)
    q = qkv[:, 0:D]
    k = qkv[:, D:2 * D]
    v = qkv[:, 2 * D:3 * D]
    qu = q + bias_u                     # q + pos_bias_u (all heads at once)
    qv = q + bias_v                     # q + pos_bias_v

    # Head-stacked layout: row r = head*N + b*T + t  ->  all heads in one MXU op.
    qu_s = jnp.concatenate([qu[:, i * DK:(i + 1) * DK] for i in range(H)], axis=0)  # (HN, DK)
    k_s = jnp.concatenate([k[:, i * DK:(i + 1) * DK] for i in range(H)], axis=0)    # (HN, DK)
    v_s = jnp.concatenate([v[:, i * DK:(i + 1) * DK] for i in range(H)], axis=0)    # (HN, DK)

    # matrix_ac for every (head, batch) block in a single matmul.
    ac = lax.dot_general(qu_s, k_s, (((1,), (1,)), ((), ())),
                         preferred_element_type=jnp.float32)                # (HN, HN)

    # matrix_bd for all heads in a single matmul against block-diagonal P.
    bd_wide = jnp.dot(qv, pblk_ref[...], preferred_element_type=jnp.float32)        # (N, H*T)
    bd = jnp.concatenate([bd_wide[:, i * T:(i + 1) * T] for i in range(H)], axis=0)  # (HN, T)

    # ---- vectorized rel_shift (exact PyTorch zero-pad / view / slice semantics) ----
    # With within-block row index t = r mod T:
    #   out[t, j <= t]    = bd[t,   j - t + T - 1]
    #   out[t, t + 1]     = 0
    #   out[t, j >= t+2]  = bd[t+1, j - t - 2]
    # A[r, j] = bd[r, (j - (t+1)) mod T] is a per-row lane roll, realized with T-1
    # static rolls + row-index selects; A_up[r] = A[r+1] (wrap rows are unused).
    row_t = lax.broadcasted_iota(jnp.int32, (HN, T), 0) & (T - 1)   # t = r mod T (T pow2)
    col_j = lax.broadcasted_iota(jnp.int32, (HN, T), 1)
    a = bd                                        # rows with t == T-1 need shift T == 0
    for s in range(1, T):
        rolled = jnp.concatenate([bd[:, T - s:], bd[:, :T - s]], axis=1)   # roll right by s
        a = jnp.where(row_t == s - 1, rolled, a)
    a_up = jnp.concatenate([a[1:, :], a[:1, :]], axis=0)
    bd_shift = jnp.where(col_j <= row_t, a,
                         jnp.where(col_j == row_t + 1, jnp.zeros_like(a), a_up))     # (HN, T)

    # Scores: tile bd across the T-wide column blocks and mask everything outside the
    # (same head, same batch) diagonal blocks, so one softmax covers all blocks exactly.
    r_idx = lax.broadcasted_iota(jnp.int32, (HN, HN), 0)
    c_idx = lax.broadcasted_iota(jnp.int32, (HN, HN), 1)
    same_block = (r_idx & (-T)) == (c_idx & (-T))   # clear low log2(T) bits -> block id
    bd_tiled = jnp.concatenate([bd_shift] * (HN // T), axis=1)              # (HN, HN)
    scores = (ac + bd_tiled) * (1.0 / math.sqrt(DK))
    scores = jnp.where(same_block, scores, jnp.float32(-1e30))

    # Softmax over keys; masked columns underflow to exactly 0 after exp.
    m = jnp.max(scores, axis=-1, keepdims=True)
    e = jnp.exp(scores - m)
    ssum = jnp.sum(e, axis=-1, keepdims=True)
    attn = e * pl.reciprocal(ssum, approx=True)

    # attn @ V for all (head, batch) blocks at once, then reassemble (N, D) context.
    ctx_s = jnp.dot(attn, v_s, preferred_element_type=jnp.float32)          # (HN, DK)
    ctx = jnp.concatenate([ctx_s[i * N:(i + 1) * N, :] for i in range(H)], axis=1)   # (N, D)

    out = jnp.dot(ctx, wout_ref[...], preferred_element_type=jnp.float32) + b_out
    out_ref[...] = out


def mha_forward(x, params):
    g0, b0, g1, b1, wqkv_t, wpos_t, wout_t, bout, bu, bv = params

    # PositionalEmbedding(pos_seq = inputs[0, :, 0]) -- batch-invariant glue (plain JAX).
    pos_seq = x[0, :, 0]
    inv_freq = 1.0 / (10000.0 ** (jnp.arange(0, D, 2, dtype=jnp.float32) / D))
    sinusoid = pos_seq[:, None] * inv_freq[None, :]
    pos_emb = jnp.concatenate([jnp.sin(sinusoid), jnp.cos(sinusoid)], axis=-1)       # (T, D)

    # Hoisted batch-invariant positional projection (f32-exact to match the kernel MXU).
    p_all = jnp.dot(pos_emb, wpos_t, precision=lax.Precision.HIGHEST)                # (T, D)

    # Block-diagonal layout so the kernel gets all heads' positional scores from one
    # (N, D) @ (D, H*T) matmul:  pblk[h*DK + d, h*T + j] = p_all[j, h*DK + d].
    p_r = p_all.reshape(T, H, DK).transpose(1, 2, 0)                                 # (H, DK, T)
    eye = jnp.eye(H, dtype=jnp.float32)
    pblk = (p_r[:, None, :, :] * eye[:, :, None, None]).transpose(0, 2, 1, 3)
    pblk = pblk.reshape(D, H * T)                                                    # (D, H*T)

    # Pack the seven tiny parameter vectors into one (7, D) operand (single DMA).
    par = jnp.concatenate(
        [g0, b0, g1, b1, bout, bu.reshape(1, D), bv.reshape(1, D)], axis=0)

    out = pl.pallas_call(
        mha_kernel,
        out_shape=jax.ShapeDtypeStruct((N, D), jnp.float32),
    )(x.reshape(N, D), pblk, par, wqkv_t, wout_t)
    return out.reshape(B, T, D)


def reference(x, params):
    """Pure-JAX replica of MHAModule.forward (eval mode) for verification."""
    g0, b0, g1, b1, wqkv_t, wpos_t, wout_t, bout, bu, bv = params
    HP = lax.Precision.HIGHEST

    pos_seq = x[0, :, 0]
    inv_freq = 1.0 / (10000.0 ** (jnp.arange(0, D, 2, dtype=jnp.float32) / D))
    sinusoid = pos_seq[:, None] * inv_freq[None, :]
    pos_emb = jnp.concatenate([jnp.sin(sinusoid), jnp.cos(sinusoid)], axis=-1)[None]

    def ln(val, g, b):
        m = val.mean(-1, keepdims=True)
        var = ((val - m) ** 2).mean(-1, keepdims=True)
        return (val - m) / jnp.sqrt(var + EPS) * g + b

    h = ln(x, g0[0], b0[0])
    hn = ln(h, g1[0], b1[0])
    qkv = jnp.einsum('btd,de->bte', hn, wqkv_t, precision=HP)
    q, k, v = jnp.split(qkv, 3, axis=-1)
    q = q.reshape(B, T, H, DK)
    k = k.reshape(B, T, H, DK).transpose(0, 2, 1, 3)
    v = v.reshape(B, T, H, DK).transpose(0, 2, 1, 3)
    p = jnp.einsum('btd,de->bte', pos_emb, wpos_t, precision=HP)
    p = p.reshape(1, T, H, DK).transpose(0, 2, 1, 3)

    qu = (q + bu[None, None]).transpose(0, 2, 1, 3)
    qv = (q + bv[None, None]).transpose(0, 2, 1, 3)
    ac = jnp.einsum('bhid,bhjd->bhij', qu, k, precision=HP)
    bd = jnp.einsum('bhid,hjd->bhij', qv, p[0], precision=HP)

    # rel_shift: zero-pad last dim, reshape, drop first row (exact PyTorch semantics)
    zp = jnp.zeros((B, H, T, 1), bd.dtype)
    xp = jnp.concatenate([zp, bd], axis=-1).reshape(B, H, T + 1, T)
    bd = xp[:, :, 1:, :].reshape(B, H, T, T)

    scores = (ac + bd) / math.sqrt(DK)
    attn = jax.nn.softmax(scores, axis=-1)
    ctx = jnp.einsum('bhij,bhjd->bhid', attn, v, precision=HP)
    ctx = ctx.transpose(0, 2, 1, 3).reshape(B, T, D)
    return jnp.einsum('btd,de->bte', ctx, wout_t, precision=HP) + bout[0][None, None]


if __name__ == "__main__":
    key = jax.random.PRNGKey(0)
    ks = jax.random.split(key, 7)

    # Deterministic synthetic parameters (shapes per module __init__).
    g0 = jnp.ones((1, D), jnp.float32)
    b0 = jnp.zeros((1, D), jnp.float32)
    g1 = jnp.ones((1, D), jnp.float32)
    b1 = jnp.zeros((1, D), jnp.float32)
    wqkv_t = jax.random.normal(ks[0], (D, 3 * D), jnp.float32) / math.sqrt(D)
    wpos_t = jax.random.normal(ks[1], (D, D), jnp.float32) / math.sqrt(D)
    wout_t = jax.random.normal(ks[2], (D, D), jnp.float32) / math.sqrt(D)
    bout = jax.random.normal(ks[3], (1, D), jnp.float32) * 0.02
    bu = jax.random.normal(ks[4], (H, DK), jnp.float32) * 0.1
    bv = jax.random.normal(ks[5], (H, DK), jnp.float32) * 0.1
    x = jax.random.normal(ks[6], (B, T, D), jnp.float32)

    params = (g0, b0, g1, b1, wqkv_t, wpos_t, wout_t, bout, bu, bv)

    out = jax.block_until_ready(mha_forward(x, params))
    ref = jax.block_until_ready(reference(x, params))

    assert out.shape == (B, T, D)
    err = float(jnp.max(jnp.abs(out - ref)))
    # 5e-3 abs tolerance: covers the EUP approximate-reciprocal softmax denominator
    # on top of MXU f32 accumulation differences vs. the HIGHEST-precision reference.
    if err > 5e-3:
        raise AssertionError(f"kernel mismatch vs reference: max abs err = {err}")
    print("KERNEL_OK")
</pallas_src>

<mosaic_0001>
module attributes {stable_mosaic.version = 11 : i64} {
  func.func @mha_kernel(%arg0: memref<16x32xf32, #tpu.memory_space<vmem>>, %arg1: memref<32x32xf32, #tpu.memory_space<vmem>>, %arg2: memref<7x32xf32, #tpu.memory_space<vmem>>, %arg3: memref<32x96xf32, #tpu.memory_space<vmem>>, %arg4: memref<32x32xf32, #tpu.memory_space<vmem>>, %arg5: memref<16x32xf32, #tpu.memory_space<vmem>>) attributes {dimension_semantics = [], scalar_prefetch = 0 : i64, scratch_operands = 0 : i64, tpu.core_type = #tpu.core_type<tc>} {
    %c0 = arith.constant 0 : index
    %c0_0 = arith.constant 0 : index
    %0 = vector.load %arg0[%c0, %c0_0] : memref<16x32xf32, #tpu.memory_space<vmem>>, vector<16x32xf32>
    %c0_1 = arith.constant 0 : index
    %c0_2 = arith.constant 0 : index
    %1 = vector.load %arg2[%c0_1, %c0_2] : memref<7x32xf32, #tpu.memory_space<vmem>>, vector<7x32xf32>
    %2 = vector.extract_strided_slice %1 {offsets = [0, 0], sizes = [1, 32], strides = [1, 1]} : vector<7x32xf32> to vector<1x32xf32>
    %3 = vector.extract_strided_slice %1 {offsets = [1, 0], sizes = [1, 32], strides = [1, 1]} : vector<7x32xf32> to vector<1x32xf32>
    %4 = vector.extract_strided_slice %1 {offsets = [2, 0], sizes = [1, 32], strides = [1, 1]} : vector<7x32xf32> to vector<1x32xf32>
    %5 = vector.extract_strided_slice %1 {offsets = [3, 0], sizes = [1, 32], strides = [1, 1]} : vector<7x32xf32> to vector<1x32xf32>
    %6 = vector.extract_strided_slice %1 {offsets = [4, 0], sizes = [1, 32], strides = [1, 1]} : vector<7x32xf32> to vector<1x32xf32>
    %7 = vector.extract_strided_slice %1 {offsets = [5, 0], sizes = [1, 32], strides = [1, 1]} : vector<7x32xf32> to vector<1x32xf32>
    %8 = vector.extract_strided_slice %1 {offsets = [6, 0], sizes = [1, 32], strides = [1, 1]} : vector<7x32xf32> to vector<1x32xf32>
    %cst = arith.constant dense<0.000000e+00> : vector<16xf32>
    %9 = vector.multi_reduction <add>, %0, %cst [1] : vector<16x32xf32> to vector<16xf32>
    %10 = vector.shape_cast %9 : vector<16xf32> to vector<16x1xf32>
    %cst_3 = arith.constant 3.200000e+01 : f32
    %11 = vector.broadcast %cst_3 : f32 to vector<16x1xf32>
    %12 = arith.divf %10, %11 : vector<16x1xf32>
    %13 = vector.broadcast %12 : vector<16x1xf32> to vector<16x32xf32>
    %14 = arith.subf %0, %13 : vector<16x32xf32>
    %15 = arith.mulf %14, %14 : vector<16x32xf32>
    %cst_4 = arith.constant dense<0.000000e+00> : vector<16xf32>
    %16 = vector.multi_reduction <add>, %15, %cst_4 [1] : vector<16x32xf32> to vector<16xf32>
    %17 = vector.shape_cast %16 : vector<16xf32> to vector<16x1xf32>
    %cst_5 = arith.constant 3.200000e+01 : f32
    %18 = vector.broadcast %cst_5 : f32 to vector<16x1xf32>
    %19 = arith.divf %17, %18 : vector<16x1xf32>
    %20 = vector.broadcast %12 : vector<16x1xf32> to vector<16x32xf32>
    %21 = arith.subf %0, %20 : vector<16x32xf32>
    %cst_6 = arith.constant 9.99999974E-6 : f32
    %22 = vector.broadcast %cst_6 : f32 to vector<16x1xf32>
    %23 = arith.addf %19, %22 : vector<16x1xf32>
    %24 = math.rsqrt %23 : vector<16x1xf32>
    %25 = vector.broadcast %24 : vector<16x1xf32> to vector<16x32xf32>
    %26 = arith.mulf %21, %25 : vector<16x32xf32>
    %27 = vector.broadcast %2 : vector<1x32xf32> to vector<16x32xf32>
    %28 = arith.mulf %26, %27 : vector<16x32xf32>
    %29 = vector.broadcast %3 : vector<1x32xf32> to vector<16x32xf32>
    %30 = arith.addf %28, %29 : vector<16x32xf32>
    %cst_7 = arith.constant dense<0.000000e+00> : vector<16xf32>
    %31 = vector.multi_reduction <add>, %30, %cst_7 [1] : vector<16x32xf32> to vector<16xf32>
    %32 = vector.shape_cast %31 : vector<16xf32> to vector<16x1xf32>
    %cst_8 = arith.constant 3.200000e+01 : f32
    %33 = vector.broadcast %cst_8 : f32 to vector<16x1xf32>
    %34 = arith.divf %32, %33 : vector<16x1xf32>
    %35 = vector.broadcast %34 : vector<16x1xf32> to vector<16x32xf32>
    %36 = arith.subf %30, %35 : vector<16x32xf32>
    %37 = arith.mulf %36, %36 : vector<16x32xf32>
    %cst_9 = arith.constant dense<0.000000e+00> : vector<16xf32>
    %38 = vector.multi_reduction <add>, %37, %cst_9 [1] : vector<16x32xf32> to vector<16xf32>
    %39 = vector.shape_cast %38 : vector<16xf32> to vector<16x1xf32>
    %cst_10 = arith.constant 3.200000e+01 : f32
    %40 = vector.broadcast %cst_10 : f32 to vector<16x1xf32>
    %41 = arith.divf %39, %40 : vector<16x1xf32>
    %42 = vector.broadcast %34 : vector<16x1xf32> to vector<16x32xf32>
    %43 = arith.subf %30, %42 : vector<16x32xf32>
    %cst_11 = arith.constant 9.99999974E-6 : f32
    %44 = vector.broadcast %cst_11 : f32 to vector<16x1xf32>
    %45 = arith.addf %41, %44 : vector<16x1xf32>
    %46 = math.rsqrt %45 : vector<16x1xf32>
    %47 = vector.broadcast %46 : vector<16x1xf32> to vector<16x32xf32>
    %48 = arith.mulf %43, %47 : vector<16x32xf32>
    %49 = vector.broadcast %4 : vector<1x32xf32> to vector<16x32xf32>
    %50 = arith.mulf %48, %49 : vector<16x32xf32>
    %51 = vector.broadcast %5 : vector<1x32xf32> to vector<16x32xf32>
    %52 = arith.addf %50, %51 : vector<16x32xf32>
    %c0_12 = arith.constant 0 : index
    %c0_13 = arith.constant 0 : index
    %53 = vector.load %arg3[%c0_12, %c0_13] : memref<32x96xf32, #tpu.memory_space<vmem>>, vector<32x96xf32>
    %cst_14 = arith.constant dense<0.000000e+00> : vector<16x96xf32>
    %54 = tpu.matmul %52, %53, %cst_14 {dimension_numbers = #tpu.dot_dimension_numbers<[1], [0], [0], [1], [0, 0, 1, 1], [], []>} : vector<16x32xf32>, vector<32x96xf32>, vector<16x96xf32> -> vector<16x96xf32>
    %55 = vector.extract_strided_slice %54 {offsets = [0, 0], sizes = [16, 32], strides = [1, 1]} : vector<16x96xf32> to vector<16x32xf32>
    %56 = vector.extract_strided_slice %54 {offsets = [0, 32], sizes = [16, 32], strides = [1, 1]} : vector<16x96xf32> to vector<16x32xf32>
    %57 = vector.extract_strided_slice %54 {offsets = [0, 64], sizes = [16, 32], strides = [1, 1]} : vector<16x96xf32> to vector<16x32xf32>
    %58 = vector.broadcast %7 : vector<1x32xf32> to vector<16x32xf32>
    %59 = arith.addf %55, %58 : vector<16x32xf32>
    %60 = vector.broadcast %8 : vector<1x32xf32> to vector<16x32xf32>
    %61 = arith.addf %55, %60 : vector<16x32xf32>
    %62 = vector.extract_strided_slice %59 {offsets = [0, 0], sizes = [16, 8], strides = [1, 1]} : vector<16x32xf32> to vector<16x8xf32>
    %63 = vector.extract_strided_slice %59 {offsets = [0, 8], sizes = [16, 8], strides = [1, 1]} : vector<16x32xf32> to vector<16x8xf32>
    %64 = vector.extract_strided_slice %59 {offsets = [0, 16], sizes = [16, 8], strides = [1, 1]} : vector<16x32xf32> to vector<16x8xf32>
    %65 = vector.extract_strided_slice %59 {offsets = [0, 24], sizes = [16, 8], strides = [1, 1]} : vector<16x32xf32> to vector<16x8xf32>
    %66 = tpu.concatenate %62, %63, %64, %65 in 0 : vector<16x8xf32>, vector<16x8xf32>, vector<16x8xf32>, vector<16x8xf32> -> vector<64x8xf32>
    %67 = vector.extract_strided_slice %56 {offsets = [0, 0], sizes = [16, 8], strides = [1, 1]} : vector<16x32xf32> to vector<16x8xf32>
    %68 = vector.extract_strided_slice %56 {offsets = [0, 8], sizes = [16, 8], strides = [1, 1]} : vector<16x32xf32> to vector<16x8xf32>
    %69 = vector.extract_strided_slice %56 {offsets = [0, 16], sizes = [16, 8], strides = [1, 1]} : vector<16x32xf32> to vector<16x8xf32>
    %70 = vector.extract_strided_slice %56 {offsets = [0, 24], sizes = [16, 8], strides = [1, 1]} : vector<16x32xf32> to vector<16x8xf32>
    %71 = tpu.concatenate %67, %68, %69, %70 in 0 : vector<16x8xf32>, vector<16x8xf32>, vector<16x8xf32>, vector<16x8xf32> -> vector<64x8xf32>
    %72 = vector.extract_strided_slice %57 {offsets = [0, 0], sizes = [16, 8], strides = [1, 1]} : vector<16x32xf32> to vector<16x8xf32>
    %73 = vector.extract_strided_slice %57 {offsets = [0, 8], sizes = [16, 8], strides = [1, 1]} : vector<16x32xf32> to vector<16x8xf32>
    %74 = vector.extract_strided_slice %57 {offsets = [0, 16], sizes = [16, 8], strides = [1, 1]} : vector<16x32xf32> to vector<16x8xf32>
    %75 = vector.extract_strided_slice %57 {offsets = [0, 24], sizes = [16, 8], strides = [1, 1]} : vector<16x32xf32> to vector<16x8xf32>
    %76 = tpu.concatenate %72, %73, %74, %75 in 0 : vector<16x8xf32>, vector<16x8xf32>, vector<16x8xf32>, vector<16x8xf32> -> vector<64x8xf32>
    %cst_15 = arith.constant dense<0.000000e+00> : vector<64x64xf32>
    %77 = tpu.matmul %66, %71, %cst_15 {dimension_numbers = #tpu.dot_dimension_numbers<[1], [1], [0], [0], [0, 0, 1, 0], [], []>} : vector<64x8xf32>, vector<64x8xf32>, vector<64x64xf32> -> vector<64x64xf32>
    %c0_16 = arith.constant 0 : index
    %c0_17 = arith.constant 0 : index
    %78 = vector.load %arg1[%c0_16, %c0_17] : memref<32x32xf32, #tpu.memory_space<vmem>>, vector<32x32xf32>
    %cst_18 = arith.constant dense<0.000000e+00> : vector<16x32xf32>
    %79 = tpu.matmul %61, %78, %cst_18 {dimension_numbers = #tpu.dot_dimension_numbers<[1], [0], [0], [1], [0, 0, 1, 1], [], []>} : vector<16x32xf32>, vector<32x32xf32>, vector<16x32xf32> -> vector<16x32xf32>
    %80 = vector.extract_strided_slice %79 {offsets = [0, 0], sizes = [16, 8], strides = [1, 1]} : vector<16x32xf32> to vector<16x8xf32>
    %81 = vector.extract_strided_slice %79 {offsets = [0, 8], sizes = [16, 8], strides = [1, 1]} : vector<16x32xf32> to vector<16x8xf32>
    %82 = vector.extract_strided_slice %79 {offsets = [0, 16], sizes = [16, 8], strides = [1, 1]} : vector<16x32xf32> to vector<16x8xf32>
    %83 = vector.extract_strided_slice %79 {offsets = [0, 24], sizes = [16, 8], strides = [1, 1]} : vector<16x32xf32> to vector<16x8xf32>
    %84 = tpu.concatenate %80, %81, %82, %83 in 0 : vector<16x8xf32>, vector<16x8xf32>, vector<16x8xf32>, vector<16x8xf32> -> vector<64x8xf32>
    %85 = tpu.iota {dimensions = array<i32: 0>} : vector<64x8xi32>
    %c7_i32 = arith.constant 7 : i32
    %86 = vector.broadcast %c7_i32 : i32 to vector<64x8xi32>
    %87 = arith.andi %85, %86 : vector<64x8xi32>
    %88 = tpu.iota {dimensions = array<i32: 1>} : vector<64x8xi32>
    %89 = vector.extract_strided_slice %84 {offsets = [0, 7], sizes = [64, 1], strides = [1, 1]} : vector<64x8xf32> to vector<64x1xf32>
    %90 = vector.extract_strided_slice %84 {offsets = [0, 0], sizes = [64, 7], strides = [1, 1]} : vector<64x8xf32> to vector<64x7xf32>
    %91 = tpu.concatenate %89, %90 in 1 : vector<64x1xf32>, vector<64x7xf32> -> vector<64x8xf32>
    %c0_i32 = arith.constant 0 : i32
    %92 = vector.broadcast %c0_i32 : i32 to vector<64x8xi32>
    %93 = arith.cmpi eq, %87, %92 : vector<64x8xi32>
    %94 = arith.select %93, %91, %84 : vector<64x8xi1>, vector<64x8xf32>
    %95 = vector.extract_strided_slice %84 {offsets = [0, 6], sizes = [64, 2], strides = [1, 1]} : vector<64x8xf32> to vector<64x2xf32>
    %96 = vector.extract_strided_slice %84 {offsets = [0, 0], sizes = [64, 6], strides = [1, 1]} : vector<64x8xf32> to vector<64x6xf32>
    %97 = tpu.concatenate %95, %96 in 1 : vector<64x2xf32>, vector<64x6xf32> -> vector<64x8xf32>
    %c1_i32 = arith.constant 1 : i32
    %98 = vector.broadcast %c1_i32 : i32 to vector<64x8xi32>
    %99 = arith.cmpi eq, %87, %98 : vector<64x8xi32>
    %100 = arith.select %99, %97, %94 : vector<64x8xi1>, vector<64x8xf32>
    %101 = vector.extract_strided_slice %84 {offsets = [0, 5], sizes = [64, 3], strides = [1, 1]} : vector<64x8xf32> to vector<64x3xf32>
    %102 = vector.extract_strided_slice %84 {offsets = [0, 0], sizes = [64, 5], strides = [1, 1]} : vector<64x8xf32> to vector<64x5xf32>
    %103 = tpu.concatenate %101, %102 in 1 : vector<64x3xf32>, vector<64x5xf32> -> vector<64x8xf32>
    %c2_i32 = arith.constant 2 : i32
    %104 = vector.broadcast %c2_i32 : i32 to vector<64x8xi32>
    %105 = arith.cmpi eq, %87, %104 : vector<64x8xi32>
    %106 = arith.select %105, %103, %100 : vector<64x8xi1>, vector<64x8xf32>
    %107 = vector.extract_strided_slice %84 {offsets = [0, 4], sizes = [64, 4], strides = [1, 1]} : vector<64x8xf32> to vector<64x4xf32>
    %108 = vector.extract_strided_slice %84 {offsets = [0, 0], sizes = [64, 4], strides = [1, 1]} : vector<64x8xf32> to vector<64x4xf32>
    %109 = tpu.concatenate %107, %108 in 1 : vector<64x4xf32>, vector<64x4xf32> -> vector<64x8xf32>
    %c3_i32 = arith.constant 3 : i32
    %110 = vector.broadcast %c3_i32 : i32 to vector<64x8xi32>
    %111 = arith.cmpi eq, %87, %110 : vector<64x8xi32>
    %112 = arith.select %111, %109, %106 : vector<64x8xi1>, vector<64x8xf32>
    %113 = vector.extract_strided_slice %84 {offsets = [0, 3], sizes = [64, 5], strides = [1, 1]} : vector<64x8xf32> to vector<64x5xf32>
    %114 = vector.extract_strided_slice %84 {offsets = [0, 0], sizes = [64, 3], strides = [1, 1]} : vector<64x8xf32> to vector<64x3xf32>
    %115 = tpu.concatenate %113, %114 in 1 : vector<64x5xf32>, vector<64x3xf32> -> vector<64x8xf32>
    %c4_i32 = arith.constant 4 : i32
    %116 = vector.broadcast %c4_i32 : i32 to vector<64x8xi32>
    %117 = arith.cmpi eq, %87, %116 : vector<64x8xi32>
    %118 = arith.select %117, %115, %112 : vector<64x8xi1>, vector<64x8xf32>
    %119 = vector.extract_strided_slice %84 {offsets = [0, 2], sizes = [64, 6], strides = [1, 1]} : vector<64x8xf32> to vector<64x6xf32>
    %120 = vector.extract_strided_slice %84 {offsets = [0, 0], sizes = [64, 2], strides = [1, 1]} : vector<64x8xf32> to vector<64x2xf32>
    %121 = tpu.concatenate %119, %120 in 1 : vector<64x6xf32>, vector<64x2xf32> -> vector<64x8xf32>
    %c5_i32 = arith.constant 5 : i32
    %122 = vector.broadcast %c5_i32 : i32 to vector<64x8xi32>
    %123 = arith.cmpi eq, %87, %122 : vector<64x8xi32>
    %124 = arith.select %123, %121, %118 : vector<64x8xi1>, vector<64x8xf32>
    %125 = vector.extract_strided_slice %84 {offsets = [0, 1], sizes = [64, 7], strides = [1, 1]} : vector<64x8xf32> to vector<64x7xf32>
    %126 = vector.extract_strided_slice %84 {offsets = [0, 0], sizes = [64, 1], strides = [1, 1]} : vector<64x8xf32> to vector<64x1xf32>
    %127 = tpu.concatenate %125, %126 in 1 : vector<64x7xf32>, vector<64x1xf32> -> vector<64x8xf32>
    %c6_i32 = arith.constant 6 : i32
    %128 = vector.broadcast %c6_i32 : i32 to vector<64x8xi32>
    %129 = arith.cmpi eq, %87, %128 : vector<64x8xi32>
    %130 = arith.select %129, %127, %124 : vector<64x8xi1>, vector<64x8xf32>
    %131 = vector.extract_strided_slice %130 {offsets = [1, 0], sizes = [63, 8], strides = [1, 1]} : vector<64x8xf32> to vector<63x8xf32>
    %132 = vector.extract_strided_slice %130 {offsets = [0, 0], sizes = [1, 8], strides = [1, 1]} : vector<64x8xf32> to vector<1x8xf32>
    %133 = tpu.concatenate %131, %132 in 0 : vector<63x8xf32>, vector<1x8xf32> -> vector<64x8xf32>
    %134 = arith.cmpi sle, %88, %87 : vector<64x8xi32>
    %c1_i32_19 = arith.constant 1 : i32
    %135 = vector.broadcast %c1_i32_19 : i32 to vector<64x8xi32>
    %136 = arith.addi %87, %135 : vector<64x8xi32>
    %137 = arith.cmpi eq, %88, %136 : vector<64x8xi32>
    %cst_20 = arith.constant 0.000000e+00 : f32
    %138 = vector.broadcast %cst_20 : f32 to vector<64x8xf32>
    %139 = arith.select %137, %138, %133 : vector<64x8xi1>, vector<64x8xf32>
    %140 = arith.select %134, %130, %139 : vector<64x8xi1>, vector<64x8xf32>
    %141 = tpu.iota {dimensions = array<i32: 0>} : vector<64x64xi32>
    %142 = tpu.iota {dimensions = array<i32: 1>} : vector<64x64xi32>
    %c-8_i32 = arith.constant -8 : i32
    %143 = vector.broadcast %c-8_i32 : i32 to vector<64x64xi32>
    %144 = arith.andi %141, %143 : vector<64x64xi32>
    %c-8_i32_21 = arith.constant -8 : i32
    %145 = vector.broadcast %c-8_i32_21 : i32 to vector<64x64xi32>
    %146 = arith.andi %142, %145 : vector<64x64xi32>
    %147 = arith.cmpi eq, %144, %146 : vector<64x64xi32>
    %148 = tpu.concatenate %140, %140, %140, %140, %140, %140, %140, %140 in 1 : vector<64x8xf32>, vector<64x8xf32>, vector<64x8xf32>, vector<64x8xf32>, vector<64x8xf32>, vector<64x8xf32>, vector<64x8xf32>, vector<64x8xf32> -> vector<64x64xf32>
    %149 = arith.addf %77, %148 : vector<64x64xf32>
    %cst_22 = arith.constant 0.353553385 : f32
    %150 = vector.broadcast %cst_22 : f32 to vector<64x64xf32>
    %151 = arith.mulf %149, %150 : vector<64x64xf32>
    %cst_23 = arith.constant -1.000000e+30 : f32
    %152 = vector.broadcast %cst_23 : f32 to vector<64x64xf32>
    %153 = arith.select %147, %151, %152 : vector<64x64xi1>, vector<64x64xf32>
    %cst_24 = arith.constant dense<0xFF800000> : vector<64xf32>
    %154 = vector.multi_reduction <maximumf>, %153, %cst_24 [1] : vector<64x64xf32> to vector<64xf32>
    %155 = vector.shape_cast %154 : vector<64xf32> to vector<64x1xf32>
    %156 = vector.broadcast %155 : vector<64x1xf32> to vector<64x64xf32>
    %157 = arith.subf %153, %156 : vector<64x64xf32>
    %158 = math.exp %157 : vector<64x64xf32>
    %cst_25 = arith.constant dense<0.000000e+00> : vector<64xf32>
    %159 = vector.multi_reduction <add>, %158, %cst_25 [1] : vector<64x64xf32> to vector<64xf32>
    %160 = vector.shape_cast %159 : vector<64xf32> to vector<64x1xf32>
    %161 = tpu.reciprocal %160 {approx = true} : vector<64x1xf32> -> vector<64x1xf32>
    %162 = vector.broadcast %161 : vector<64x1xf32> to vector<64x64xf32>
    %163 = arith.mulf %158, %162 : vector<64x64xf32>
    %cst_26 = arith.constant dense<0.000000e+00> : vector<64x8xf32>
    %164 = tpu.matmul %163, %76, %cst_26 {dimension_numbers = #tpu.dot_dimension_numbers<[1], [0], [0], [1], [0, 0, 1, 1], [], []>} : vector<64x64xf32>, vector<64x8xf32>, vector<64x8xf32> -> vector<64x8xf32>
    %165 = vector.extract_strided_slice %164 {offsets = [0, 0], sizes = [16, 8], strides = [1, 1]} : vector<64x8xf32> to vector<16x8xf32>
    %166 = vector.extract_strided_slice %164 {offsets = [16, 0], sizes = [16, 8], strides = [1, 1]} : vector<64x8xf32> to vector<16x8xf32>
    %167 = vector.extract_strided_slice %164 {offsets = [32, 0], sizes = [16, 8], strides = [1, 1]} : vector<64x8xf32> to vector<16x8xf32>
    %168 = vector.extract_strided_slice %164 {offsets = [48, 0], sizes = [16, 8], strides = [1, 1]} : vector<64x8xf32> to vector<16x8xf32>
    %169 = tpu.concatenate %165, %166, %167, %168 in 1 : vector<16x8xf32>, vector<16x8xf32>, vector<16x8xf32>, vector<16x8xf32> -> vector<16x32xf32>
    %c0_27 = arith.constant 0 : index
    %c0_28 = arith.constant 0 : index
    %170 = vector.load %arg4[%c0_27, %c0_28] : memref<32x32xf32, #tpu.memory_space<vmem>>, vector<32x32xf32>
    %cst_29 = arith.constant dense<0.000000e+00> : vector<16x32xf32>
    %171 = tpu.matmul %169, %170, %cst_29 {dimension_numbers = #tpu.dot_dimension_numbers<[1], [0], [0], [1], [0, 0, 1, 1], [], []>} : vector<16x32xf32>, vector<32x32xf32>, vector<16x32xf32> -> vector<16x32xf32>
    %172 = vector.broadcast %6 : vector<1x32xf32> to vector<16x32xf32>
    %173 = arith.addf %171, %172 : vector<16x32xf32>
    %c0_30 = arith.constant 0 : index
    %c0_31 = arith.constant 0 : index
    %174 = vector.load %arg5[%c0_30, %c0_31] : memref<16x32xf32, #tpu.memory_space<vmem>>, vector<16x32xf32>
    tpu.vector_store %arg5[%c0_30, %c0_31], %173 {strides = array<i32>} : memref<16x32xf32, #tpu.memory_space<vmem>>, vector<16x32xf32>,
    return
  }
}

</mosaic_0001>

<llo_original>
// kernel: tpu_custom_call.1
$region0: #{tpu_custom_call.1}
  #allocation0 [shape = 'u32[]', space=smem, size = 0x4, offset = 0x4, fixed_abs, tag = 'smem constant byte address 0x4 - core index']
  #allocation1 [shape = 'u32[144,128]{1,0:T(1,128)}', space=vmem, size = 0x12000, scoped, tag = 'internal scratch']
  %s0 = inlined_call_operand.hbm [shape: f32[16,32], index: 0, kind: input, shape index: {}]
  %s1 = inlined_call_operand.hbm [shape: f32[32,32], index: 1, kind: input, shape index: {}]
  %s2 = inlined_call_operand.hbm [shape: f32[7,32], index: 2, kind: input, shape index: {}]
  %s3 = inlined_call_operand.hbm [shape: f32[32,96], index: 3, kind: input, shape index: {}]
  %s4 = inlined_call_operand.hbm [shape: f32[32,32], index: 4, kind: input, shape index: {}]
  %s5 = inlined_call_operand.hbm [shape: f32[16,32], index: 5, kind: output, shape index: {}]
  %s6 = sld [smem:[#allocation0]]
  $region50: #{tpu_custom_call.1} parent=0
    _
  %s8 = ssub.s32 1, %s6
  %s9 = scalar_select 0, %s8, %s6
  $region1: #{tpu_custom_call.1} parent=0
    #allocation2 [shape = 'u8[8192]{0}', space=vmem, size = 0x2000, scoped, tag = 'input window, operand 0, single buffered']
    #allocation3 [shape = 's32[1]{0}', space=sflag, size = 0x4, scoped, tag = 'scoped memory for tpu_custom_call.1']
    #allocation4 [shape = 's32[1]{0}', space=sflag, size = 0x4, scoped, tag = 'scoped memory for tpu_custom_call.1']
    #allocation5 [shape = 'u8[16384]{0}', space=vmem, size = 0x4000, scoped, tag = 'input window, operand 1, single buffered']
    #allocation6 [shape = 's32[1]{0}', space=sflag, size = 0x4, scoped, tag = 'scoped memory for tpu_custom_call.1']
    #allocation7 [shape = 'u8[4096]{0}', space=vmem, size = 0x1000, scoped, tag = 'input window, operand 2, single buffered']
    #allocation8 [shape = 'u8[16384]{0}', space=vmem, size = 0x4000, scoped, tag = 'input window, operand 3, single buffered']
    #allocation9 [shape = 's32[1]{0}', space=sflag, size = 0x4, scoped, tag = 'scoped memory for tpu_custom_call.1']
    #allocation10 [shape = 'u8[16384]{0}', space=vmem, size = 0x4000, scoped, tag = 'input window, operand 4, single buffered']
    #allocation11 [shape = 'u8[8192]{0}', space=vmem, size = 0x2000, scoped, tag = 'output window, operand 0, single buffered']
    %10 = vsyncpa [#allocation3], 0
    %11 = vsyncpa [#allocation6], 0
    %12 = vsyncpa [#allocation9], 0
    %13 = vsyncpa [#allocation4], 0
    // Predicated region
    $region2: #{tpu_custom_call.1} parent=1 // pred_check
      _
    $region3: #{tpu_custom_call.1} parent=1 // pred_check_branch
      %15 = sbr.rel (0) target = $region5
    $region4: #{tpu_custom_call.1} parent=1 // pred_region
      %s17 = ssub.s32 256, 256
      %18 = vsyncadd [#allocation3], %s17
      %s19 = sshll.u32 [#allocation2], 4
      %s20 = int_to_ptr.vmem [resolvable:$true] %s19
      %25 = dma.hbm_to_vmem [thread:$0]  %s0, 256, %s20, [#allocation3], 128, 128, 8
    $region5: #{tpu_custom_call.1} parent=1 // pred_fallthru
      _
    // Predicated region
    $region6: #{tpu_custom_call.1} parent=1 // pred_check
      _
    $region7: #{tpu_custom_call.1} parent=1 // pred_check_branch
      %27 = sbr.rel (0) target = $region9
    $region8: #{tpu_custom_call.1} parent=1 // pred_region
      %s29 = ssub.s32 512, 512
      %30 = vsyncadd [#allocation6], %s29
      %s31 = sshll.u32 [#allocation5], 4
      %s32 = int_to_ptr.vmem [resolvable:$true] %s31
      %37 = dma.hbm_to_vmem [thread:$0]  %s1, 512, %s32, [#allocation6], 128, 128, 8
    $region9: #{tpu_custom_call.1} parent=1 // pred_fallthru
      _
    // Predicated region
    $region10: #{tpu_custom_call.1} parent=1 // pred_check
      _
    $region11: #{tpu_custom_call.1} parent=1 // pred_check_branch
      %39 = sbr.rel (0) target = $region13
    $region12: #{tpu_custom_call.1} parent=1 // pred_region
      %s41 = ssub.s32 128, 128
      %42 = vsyncadd [#allocation6], %s41
      %s44 = sshll.u32 [#allocation7], 4
      %s45 = int_to_ptr.vmem [resolvable:$true] %s44
      %47 = dma.hbm_to_vmem [thread:$0]  %s2, 128, %s45, [#allocation6]
    $region13: #{tpu_custom_call.1} parent=1 // pred_fallthru
      _
    // Predicated region
    $region14: #{tpu_custom_call.1} parent=1 // pred_check
      _
    $region15: #{tpu_custom_call.1} parent=1 // pred_check_branch
      %49 = sbr.rel (0) target = $region17
    $region16: #{tpu_custom_call.1} parent=1 // pred_region
      %s51 = ssub.s32 512, 512
      %52 = vsyncadd [#allocation9], %s51
      %s53 = sshll.u32 [#allocation8], 4
      %s54 = int_to_ptr.vmem [resolvable:$true] %s53
      %59 = dma.hbm_to_vmem [thread:$0]  %s3, 512, %s54, [#allocation9], 128, 128, 8
    $region17: #{tpu_custom_call.1} parent=1 // pred_fallthru
      _
    // Predicated region
    $region18: #{tpu_custom_call.1} parent=1 // pred_check
      _
    $region19: #{tpu_custom_call.1} parent=1 // pred_check_branch
      %61 = sbr.rel (0) target = $region21
    $region20: #{tpu_custom_call.1} parent=1 // pred_region
      %s63 = ssub.s32 512, 512
      %64 = vsyncadd [#allocation9], %s63
      %s65 = sshll.u32 [#allocation10], 4
      %s66 = int_to_ptr.vmem [resolvable:$true] %s65
      %71 = dma.hbm_to_vmem [thread:$0]  %s4, 512, %s66, [#allocation9], 128, 128, 8
    $region21: #{tpu_custom_call.1} parent=1 // pred_fallthru
      _
    // Predicated region
    $region22: #{tpu_custom_call.1} parent=1 // pred_check
      _
    $region23: #{tpu_custom_call.1} parent=1 // pred_check_branch
      %73 = sbr.rel (0) target = $region25
    $region24: #{tpu_custom_call.1} parent=1 // pred_region
      %74 = dma.done [#allocation3], 256
    $region25: #{tpu_custom_call.1} parent=1 // pred_fallthru
      _
    // Predicated region
    $region26: #{tpu_custom_call.1} parent=1 // pred_check
      _
    $region27: #{tpu_custom_call.1} parent=1 // pred_check_branch
      %76 = sbr.rel (0) target = $region29
    $region28: #{tpu_custom_call.1} parent=1 // pred_region
      %77 = dma.done [#allocation6], 512
    $region29: #{tpu_custom_call.1} parent=1 // pred_fallthru
      _
    // Predicated region
    $region30: #{tpu_custom_call.1} parent=1 // pred_check
      _
    $region31: #{tpu_custom_call.1} parent=1 // pred_check_branch
      %79 = sbr.rel (0) target = $region33
    $region32: #{tpu_custom_call.1} parent=1 // pred_region
      %80 = dma.done [#allocation6], 128
    $region33: #{tpu_custom_call.1} parent=1 // pred_fallthru
      _
    // Predicated region
    $region34: #{tpu_custom_call.1} parent=1 // pred_check
      _
    $region35: #{tpu_custom_call.1} parent=1 // pred_check_branch
      %82 = sbr.rel (0) target = $region37
    $region36: #{tpu_custom_call.1} parent=1 // pred_region
      %83 = dma.done [#allocation9], 512
    $region37: #{tpu_custom_call.1} parent=1 // pred_fallthru
      _
    // Predicated region
    $region38: #{tpu_custom_call.1} parent=1 // pred_check
      _
    $region39: #{tpu_custom_call.1} parent=1 // pred_check_branch
      %85 = sbr.rel (0) target = $region41
    $region40: #{tpu_custom_call.1} parent=1 // pred_region
      %86 = dma.done [#allocation9], 512
    $region41: #{tpu_custom_call.1} parent=1 // pred_fallthru
      _
    %v87 = vld [vmem:[#allocation2] sm:$0xff]
    %v88 = vld [vmem:[#allocation2 + $0x8] sm:$0xff]
    %v89 = vld [vmem:[#allocation7] sm:$0x7f]
    %vm90 = vcmask 261120
    %v91 = vsel %vm90, %v87, 0.0
    %92 = vadd.xlane.f32.xlu0 %v91
    %v93 = vpop.xlane.xlu0 %92
    %v94 = vsel %vm90, %v88, 0.0
    %95 = vadd.xlane.f32.xlu0 %v94
    %v96 = vpop.xlane.xlu0 %95
    %v97 = vrcp.pop 32.0
    %v98 = vmul.f32 %v93, %v97
    %v99 = vmul.f32 %v96, %v97
    %v100 = vsub.f32 %v87, %v98
    %v101 = vsub.f32 %v88, %v99
    %v102 = vmul.f32 %v100, %v100
    %v103 = vmul.f32 %v101, %v101
    %v104 = vsel %vm90, %v102, 0.0
    %105 = vadd.xlane.f32.xlu0 %v104
    %v106 = vpop.xlane.xlu0 %105
    %v107 = vsel %vm90, %v103, 0.0
    %108 = vadd.xlane.f32.xlu0 %v107
    %v109 = vpop.xlane.xlu0 %108
    %v110 = vmul.f32 %v106, %v97
    %v111 = vmul.f32 %v109, %v97
    %v112 = vadd.f32 %v110, 1e-05
    %v113 = vadd.f32 %v111, 1e-05
    %v114 = vrsqrt.pop %v112
    %v115 = vrsqrt.pop %v113
    %v116 = vmul.f32 %v100, %v114
    %v117 = vmul.f32 %v101, %v115
    %v118 = vlaneseq
    %v119 = vshrl.u32 %v118, 7
    %v120 = vsub.s32 0, %v119
    %v121 = vrot.slane %v89, %v120
    %v122 = vmul.f32 %v116, %v121
    %v123 = vmul.f32 %v117, %v121
    %v124 = vlaneseq
    %v125 = vshrl.u32 %v124, 7
    %v126 = vsub.s32 1, %v125
    %v127 = vrot.slane %v89, %v126
    %v128 = vadd.f32 %v122, %v127
    %v129 = vadd.f32 %v123, %v127
    %v130 = vsel %vm90, %v128, 0.0
    %131 = vadd.xlane.f32.xlu0 %v130
    %v132 = vpop.xlane.xlu0 %131
    %v133 = vsel %vm90, %v129, 0.0
    %134 = vadd.xlane.f32.xlu0 %v133
    %v135 = vpop.xlane.xlu0 %134
    %v136 = vmul.f32 %v132, %v97
    %v137 = vmul.f32 %v135, %v97
    %v138 = vsub.f32 %v128, %v136
    %v139 = vsub.f32 %v129, %v137
    %v140 = vmul.f32 %v138, %v138
    %v141 = vmul.f32 %v139, %v139
    %v142 = vsel %vm90, %v140, 0.0
    %143 = vadd.xlane.f32.xlu0 %v142
    %v144 = vpop.xlane.xlu0 %143
    %v145 = vsel %vm90, %v141, 0.0
    %146 = vadd.xlane.f32.xlu0 %v145
    %v147 = vpop.xlane.xlu0 %146
    %v148 = vmul.f32 %v144, %v97
    %v149 = vmul.f32 %v147, %v97
    %v150 = vadd.f32 %v148, 1e-05
    %v151 = vadd.f32 %v149, 1e-05
    %v152 = vrsqrt.pop %v150
    %v153 = vrsqrt.pop %v151
    %v154 = vmul.f32 %v138, %v152
    %v155 = vmul.f32 %v139, %v153
    %v156 = vlaneseq
    %v157 = vshrl.u32 %v156, 7
    %v158 = vsub.s32 2, %v157
    %v159 = vrot.slane %v89, %v158
    %v160 = vmul.f32 %v154, %v159
    %v161 = vmul.f32 %v155, %v159
    %v162 = vlaneseq
    %v163 = vshrl.u32 %v162, 7
    %v164 = vsub.s32 3, %v163
    %v165 = vrot.slane %v89, %v164
    %v166 = vadd.f32 %v160, %v165
    %v167 = vadd.f32 %v161, %v165
    %v168 = vld [vmem:[#allocation8] sm:$0xff]
    %v169 = vld [vmem:[#allocation8 + $0x8] sm:$0xff]
    %v170 = vld [vmem:[#allocation8 + $0x10] sm:$0xff]
    %v171 = vld [vmem:[#allocation8 + $0x18] sm:$0xff]
    %v173 = vsel %vm90, %v166, 0
    %v176 = vsel %vm90, %v167, 0
    %178 = vmatprep.subr.mxu0 0.0
    %179 = vmatpush1.msra.mxu0 %v168
    %180 = vmatprep.subr.mxu0 0.0
    %181 = vmatpush1.msra.mxu0 %v169
    %182 = vmatprep.subr.mxu0 0.0
    %183 = vmatpush1.msra.mxu0 %v170
    %184 = vmatprep.subr.mxu0 0.0
    %185 = vmatpush1.msra.mxu0 %v171
    %186 = vmatprep.subr.mxu0 0.0
    %187 = vmatpush1.msra.mxu0 0.0
    %188 = vmatprep.subr.mxu0 0.0
    %189 = vmatpush1.msra.mxu0 0.0
    %190 = vmatprep.subr.mxu0 0.0
    %191 = vmatpush1.msra.mxu0 0.0
    %192 = vmatprep.subr.mxu0 0.0
    %193 = vmatpush1.msra.mxu0 0.0
    %194 = vmatprep.subr.mxu0 0.0
    %195 = vmatpush1.msra.mxu0 0.0
    %196 = vmatprep.subr.mxu0 0.0
    %197 = vmatpush1.msra.mxu0 0.0
    %198 = vmatprep.subr.mxu0 0.0
    %199 = vmatpush1.msra.mxu0 0.0
    %200 = vmatprep.subr.mxu0 0.0
    %201 = vmatpush1.msra.mxu0 0.0
    %202 = vmatprep.subr.mxu0 0.0
    %203 = vmatpush1.msra.mxu0 0.0
    %204 = vmatprep.subr.mxu0 0.0
    %205 = vmatpush1.msra.mxu0 0.0
    %206 = vmatprep.subr.mxu0 0.0
    %207 = vmatpush1.msra.mxu0 0.0
    %208 = vmatprep.subr.mxu0 0.0
    %209 = vmatpush1.msra.mxu0 0.0
    %210 = vmatprep.subr.mxu0 0.0
    %211 = vmatpush1.msra.mxu0 0.0
    %212 = vmatprep.subr.mxu0 0.0
    %213 = vmatpush1.msra.mxu0 0.0
    %214 = vmatprep.subr.mxu0 0.0
    %215 = vmatpush1.msra.mxu0 0.0
    %216 = vmatprep.subr.mxu0 0.0
    %217 = vmatpush1.msra.mxu0 0.0
    %218 = vmatprep.subr.mxu0 0.0
    %219 = vmatpush1.msra.mxu0 0.0
    %220 = vmatprep.subr.mxu0 0.0
    %221 = vmatpush1.msra.mxu0 0.0
    %222 = vmatprep.subr.mxu0 0.0
    %223 = vmatpush1.msra.mxu0 0.0
    %224 = vmatprep.subr.mxu0 0.0
    %225 = vmatpush1.msra.mxu0 0.0
    %226 = vmatprep.subr.mxu0 0.0
    %227 = vmatpush1.msra.mxu0 0.0
    %228 = vmatprep.subr.mxu0 0.0
    %229 = vmatpush1.msra.mxu0 0.0
    %230 = vmatprep.subr.mxu0 0.0
    %231 = vmatpush1.msra.mxu0 0.0
    %232 = vmatprep.subr.mxu0 0.0
    %233 = vmatpush1.msra.mxu0 0.0
    %234 = vmatprep.subr.mxu0 0.0
    %235 = vmatpush1.msra.mxu0 0.0
    %236 = vmatprep.subr.mxu0 0.0
    %237 = vmatpush1.msra.mxu0 0.0
    %238 = vmatprep.subr.mxu0 0.0
    %239 = vmatpush1.msra.mxu0 0.0
    %240 = vmatprep.subr.mxu0 0.0
    %241 = vmatpush1.msra.mxu0 0.0
    %242 = vmatprep.mubr.f32.mxu0 0.0
    %243 = vmatmul.mubr.f32.gmra.mrb[0].mxu0 %v173
    %v244 = vpop.f32.mrb[0].mxu0
    %v245 = vadd.f32 0.0, %v244
    %v246 = vpop.f32.mrb[0].mxu0
    %247 = vmatprep.mubr.f32.mxu0 0.0
    %248 = vmatmul.mubr.f32.gmra.mrb[0].mxu0 %v176
    %v249 = vpop.f32.mrb[0].mxu0
    %v250 = vadd.f32 0.0, %v249
    %v251 = vpop.f32.mrb[0].mxu0
    %252 = vdwg.mxu0
    %v253 = vlaneseq
    %v254 = vshrl.u32 %v253, 7
    %v255 = vsub.s32 5, %v254
    %v256 = vrot.slane %v89, %v255
    %v257 = vadd.f32 %v245, %v256
    %v258 = vadd.f32 %v250, %v256
    %v259 = vlaneseq
    %v260 = vshrl.u32 %v259, 7
    %v261 = vsub.s32 6, %v260
    %v262 = vrot.slane %v89, %v261
    %v263 = vadd.f32 %v245, %v262
    %v264 = vadd.f32 %v250, %v262
    %267 = vrot.lane.b32.xlu0 %v257, 120
    %v268 = vpop.permute.xlu0 %267
    %269 = vrot.lane.b32.xlu0 %v258, 120
    %v270 = vpop.permute.xlu0 %269
    %271 = vrot.lane.b32.xlu0 %v257, 112
    %v272 = vpop.permute.xlu0 %271
    %273 = vrot.lane.b32.xlu0 %v258, 112
    %v274 = vpop.permute.xlu0 %273
    %275 = vrot.lane.b32.xlu0 %v257, 104
    %v276 = vpop.permute.xlu0 %275
    %277 = vrot.lane.b32.xlu0 %v258, 104
    %v278 = vpop.permute.xlu0 %277
    %281 = vrot.lane.b32.xlu0 %v245, 120
    %v282 = vpop.permute.xlu0 %281
    %283 = vrot.lane.b32.xlu0 %v250, 120
    %v284 = vpop.permute.xlu0 %283
    %285 = vrot.lane.b32.xlu0 %v245, 112
    %v286 = vpop.permute.xlu0 %285
    %287 = vrot.lane.b32.xlu0 %v250, 112
    %v288 = vpop.permute.xlu0 %287
    %289 = vrot.lane.b32.xlu0 %v245, 104
    %v290 = vpop.permute.xlu0 %289
    %291 = vrot.lane.b32.xlu0 %v250, 104
    %v292 = vpop.permute.xlu0 %291
    %v293 = vld [vmem:[#allocation5] sm:$0xff]
    %v294 = vld [vmem:[#allocation5 + $0x8] sm:$0xff]
    %v295 = vld [vmem:[#allocation5 + $0x10] sm:$0xff]
    %v296 = vld [vmem:[#allocation5 + $0x18] sm:$0xff]
    %v298 = vsel %vm90, %v263, 0
    %v301 = vsel %vm90, %v264, 0
    %303 = vmatprep.subr.mxu0 0.0
    %304 = vmatpush1.msra.mxu0 %v293
    %305 = vmatprep.subr.mxu0 0.0
    %306 = vmatpush1.msra.mxu0 %v294
    %307 = vmatprep.subr.mxu0 0.0
    %308 = vmatpush1.msra.mxu0 %v295
    %309 = vmatprep.subr.mxu0 0.0
    %310 = vmatpush1.msra.mxu0 %v296
    %311 = vmatprep.subr.mxu0 0.0
    %312 = vmatpush1.msra.mxu0 0.0
    %313 = vmatprep.subr.mxu0 0.0
    %314 = vmatpush1.msra.mxu0 0.0
    %315 = vmatprep.subr.mxu0 0.0
    %316 = vmatpush1.msra.mxu0 0.0
    %317 = vmatprep.subr.mxu0 0.0
    %318 = vmatpush1.msra.mxu0 0.0
    %319 = vmatprep.subr.mxu0 0.0
    %320 = vmatpush1.msra.mxu0 0.0
    %321 = vmatprep.subr.mxu0 0.0
    %322 = vmatpush1.msra.mxu0 0.0
    %323 = vmatprep.subr.mxu0 0.0
    %324 = vmatpush1.msra.mxu0 0.0
    %325 = vmatprep.subr.mxu0 0.0
    %326 = vmatpush1.msra.mxu0 0.0
    %327 = vmatprep.subr.mxu0 0.0
    %328 = vmatpush1.msra.mxu0 0.0
    %329 = vmatprep.subr.mxu0 0.0
    %330 = vmatpush1.msra.mxu0 0.0
    %331 = vmatprep.subr.mxu0 0.0
    %332 = vmatpush1.msra.mxu0 0.0
    %333 = vmatprep.subr.mxu0 0.0
    %334 = vmatpush1.msra.mxu0 0.0
    %335 = vmatprep.subr.mxu0 0.0
    %336 = vmatpush1.msra.mxu0 0.0
    %337 = vmatprep.subr.mxu0 0.0
    %338 = vmatpush1.msra.mxu0 0.0
    %339 = vmatprep.subr.mxu0 0.0
    %340 = vmatpush1.msra.mxu0 0.0
    %341 = vmatprep.subr.mxu0 0.0
    %342 = vmatpush1.msra.mxu0 0.0
    %343 = vmatprep.subr.mxu0 0.0
    %344 = vmatpush1.msra.mxu0 0.0
    %345 = vmatprep.subr.mxu0 0.0
    %346 = vmatpush1.msra.mxu0 0.0
    %347 = vmatprep.subr.mxu0 0.0
    %348 = vmatpush1.msra.mxu0 0.0
    %349 = vmatprep.subr.mxu0 0.0
    %350 = vmatpush1.msra.mxu0 0.0
    %351 = vmatprep.subr.mxu0 0.0
    %352 = vmatpush1.msra.mxu0 0.0
    %353 = vmatprep.subr.mxu0 0.0
    %354 = vmatpush1.msra.mxu0 0.0
    %355 = vmatprep.subr.mxu0 0.0
    %356 = vmatpush1.msra.mxu0 0.0
    %357 = vmatprep.subr.mxu0 0.0
    %358 = vmatpush1.msra.mxu0 0.0
    %359 = vmatprep.subr.mxu0 0.0
    %360 = vmatpush1.msra.mxu0 0.0
    %361 = vmatprep.subr.mxu0 0.0
    %362 = vmatpush1.msra.mxu0 0.0
    %363 = vmatprep.subr.mxu0 0.0
    %364 = vmatpush1.msra.mxu0 0.0
    %365 = vmatprep.subr.mxu0 0.0
    %366 = vmatpush1.msra.mxu0 0.0
    %367 = vmatprep.mubr.f32.mxu0 0.0
    %368 = vmatmul.mubr.f32.gmra.mrb[0].mxu0 %v298
    %v369 = vpop.f32.mrb[0].mxu0
    %v370 = vadd.f32 0.0, %v369
    %v371 = vpop.f32.mrb[0].mxu0
    %372 = vmatprep.mubr.f32.mxu0 0.0
    %373 = vmatmul.mubr.f32.gmra.mrb[0].mxu0 %v301
    %v374 = vpop.f32.mrb[0].mxu0
    %v375 = vadd.f32 0.0, %v374
    %v376 = vpop.f32.mrb[0].mxu0
    %377 = vdwg.mxu0
    %380 = vrot.lane.b32.xlu0 %v370, 120
    %v381 = vpop.permute.xlu0 %380
    %382 = vrot.lane.b32.xlu0 %v375, 120
    %v383 = vpop.permute.xlu0 %382
    %386 = vrot.lane.b32.xlu0 %v370, 112
    %v387 = vpop.permute.xlu0 %386
    %388 = vrot.lane.b32.xlu0 %v375, 112
    %v389 = vpop.permute.xlu0 %388
    %392 = vrot.lane.b32.xlu0 %v370, 104
    %v393 = vpop.permute.xlu0 %392
    %394 = vrot.lane.b32.xlu0 %v375, 104
    %v395 = vpop.permute.xlu0 %394
    %v398 = vlaneseq
    %v399 = vshrl.u32 %v398, 7
    %v400 = vadd.s32 %v399, 8
    %v401 = vadd.s32 %v399, 16
    %v402 = vadd.s32 %v399, 24
    %v403 = vadd.s32 %v399, 32
    %v404 = vadd.s32 %v399, 40
    %v405 = vadd.s32 %v399, 48
    %v406 = vadd.s32 %v399, 56
    %v407 = vand.u32 %v399, 7
    %v408 = vand.u32 %v400, 7
    %v409 = vand.u32 %v401, 7
    %v410 = vand.u32 %v402, 7
    %v411 = vand.u32 %v403, 7
    %v412 = vand.u32 %v404, 7
    %v413 = vand.u32 %v405, 7
    %v414 = vand.u32 %v406, 7
    %v415 = vlaneseq
    %v416 = vand.u32 %v415, 127
    %417 = vrot.lane.b32.xlu0 %v370, 121
    %v418 = vpop.permute.xlu0 %417
    %419 = vrot.lane.b32.xlu0 %v375, 121
    %v420 = vpop.permute.xlu0 %419
    %421 = vrot.lane.b32.xlu0 %v381, 121
    %v422 = vpop.permute.xlu0 %421
    %423 = vrot.lane.b32.xlu0 %v383, 121
    %v424 = vpop.permute.xlu0 %423
    %425 = vrot.lane.b32.xlu0 %v387, 121
    %v426 = vpop.permute.xlu0 %425
    %427 = vrot.lane.b32.xlu0 %v389, 121
    %v428 = vpop.permute.xlu0 %427
    %429 = vrot.lane.b32.xlu0 %v393, 121
    %v430 = vpop.permute.xlu0 %429
    %431 = vrot.lane.b32.xlu0 %v395, 121
    %v432 = vpop.permute.xlu0 %431
    %441 = vrot.lane.b32.xlu0 %v370, 1
    %v442 = vpop.permute.xlu0 %441
    %443 = vrot.lane.b32.xlu0 %v375, 1
    %v444 = vpop.permute.xlu0 %443
    %445 = vrot.lane.b32.xlu0 %v381, 1
    %v446 = vpop.permute.xlu0 %445
    %447 = vrot.lane.b32.xlu0 %v383, 1
    %v448 = vpop.permute.xlu0 %447
    %449 = vrot.lane.b32.xlu0 %v387, 1
    %v450 = vpop.permute.xlu0 %449
    %451 = vrot.lane.b32.xlu0 %v389, 1
    %v452 = vpop.permute.xlu0 %451
    %453 = vrot.lane.b32.xlu0 %v393, 1
    %v454 = vpop.permute.xlu0 %453
    %455 = vrot.lane.b32.xlu0 %v395, 1
    %v456 = vpop.permute.xlu0 %455
    %vm465 = vcmask 7168
    %v466 = vsel %vm465, %v418, %v442
    %v467 = vsel %vm465, %v420, %v444
    %v468 = vsel %vm465, %v422, %v446
    %v469 = vsel %vm465, %v424, %v448
    %v470 = vsel %vm465, %v426, %v450
    %v471 = vsel %vm465, %v428, %v452
    %v472 = vsel %vm465, %v430, %v454
    %v473 = vsel %vm465, %v432, %v456
    %vm474 = vcmp.eq.s32.totalorder %v407, 0
    %vm475 = vcmp.eq.s32.totalorder %v408, 0
    %vm476 = vcmp.eq.s32.totalorder %v409, 0
    %vm477 = vcmp.eq.s32.totalorder %v410, 0
    %vm478 = vcmp.eq.s32.totalorder %v411, 0
    %vm479 = vcmp.eq.s32.totalorder %v412, 0
    %vm480 = vcmp.eq.s32.totalorder %v413, 0
    %vm481 = vcmp.eq.s32.totalorder %v414, 0
    %v482 = vsel %vm474, %v466, %v370
    %v483 = vsel %vm475, %v467, %v375
    %v484 = vsel %vm476, %v468, %v381
    %v485 = vsel %vm477, %v469, %v383
    %v486 = vsel %vm478, %v470, %v387
    %v487 = vsel %vm479, %v471, %v389
    %v488 = vsel %vm480, %v472, %v393
    %v489 = vsel %vm481, %v473, %v395
    %490 = vrot.lane.b32.xlu0 %v370, 122
    %v491 = vpop.permute.xlu0 %490
    %492 = vrot.lane.b32.xlu0 %v375, 122
    %v493 = vpop.permute.xlu0 %492
    %494 = vrot.lane.b32.xlu0 %v381, 122
    %v495 = vpop.permute.xlu0 %494
    %496 = vrot.lane.b32.xlu0 %v383, 122
    %v497 = vpop.permute.xlu0 %496
    %498 = vrot.lane.b32.xlu0 %v387, 122
    %v499 = vpop.permute.xlu0 %498
    %500 = vrot.lane.b32.xlu0 %v389, 122
    %v501 = vpop.permute.xlu0 %500
    %502 = vrot.lane.b32.xlu0 %v393, 122
    %v503 = vpop.permute.xlu0 %502
    %504 = vrot.lane.b32.xlu0 %v395, 122
    %v505 = vpop.permute.xlu0 %504
    %514 = vrot.lane.b32.xlu0 %v370, 2
    %v515 = vpop.permute.xlu0 %514
    %516 = vrot.lane.b32.xlu0 %v375, 2
    %v517 = vpop.permute.xlu0 %516
    %518 = vrot.lane.b32.xlu0 %v381, 2
    %v519 = vpop.permute.xlu0 %518
    %520 = vrot.lane.b32.xlu0 %v383, 2
    %v521 = vpop.permute.xlu0 %520
    %522 = vrot.lane.b32.xlu0 %v387, 2
    %v523 = vpop.permute.xlu0 %522
    %524 = vrot.lane.b32.xlu0 %v389, 2
    %v525 = vpop.permute.xlu0 %524
    %526 = vrot.lane.b32.xlu0 %v393, 2
    %v527 = vpop.permute.xlu0 %526
    %528 = vrot.lane.b32.xlu0 %v395, 2
    %v529 = vpop.permute.xlu0 %528
    %vm538 = vcmask 15360
    %v539 = vsel %vm538, %v491, %v515
    %v540 = vsel %vm538, %v493, %v517
    %v541 = vsel %vm538, %v495, %v519
    %v542 = vsel %vm538, %v497, %v521
    %v543 = vsel %vm538, %v499, %v523
    %v544 = vsel %vm538, %v501, %v525
    %v545 = vsel %vm538, %v503, %v527
    %v546 = vsel %vm538, %v505, %v529
    %vm547 = vcmp.eq.s32.totalorder %v407, 1
    %vm548 = vcmp.eq.s32.totalorder %v408, 1
    %vm549 = vcmp.eq.s32.totalorder %v409, 1
    %vm550 = vcmp.eq.s32.totalorder %v410, 1
    %vm551 = vcmp.eq.s32.totalorder %v411, 1
    %vm552 = vcmp.eq.s32.totalorder %v412, 1
    %vm553 = vcmp.eq.s32.totalorder %v413, 1
    %vm554 = vcmp.eq.s32.totalorder %v414, 1
    %v555 = vsel %vm547, %v539, %v482
    %v556 = vsel %vm548, %v540, %v483
    %v557 = vsel %vm549, %v541, %v484
    %v558 = vsel %vm550, %v542, %v485
    %v559 = vsel %vm551, %v543, %v486
    %v560 = vsel %vm552, %v544, %v487
    %v561 = vsel %vm553, %v545, %v488
    %v562 = vsel %vm554, %v546, %v489
    %563 = vrot.lane.b32.xlu0 %v370, 123
    %v564 = vpop.permute.xlu0 %563
    %565 = vrot.lane.b32.xlu0 %v375, 123
    %v566 = vpop.permute.xlu0 %565
    %567 = vrot.lane.b32.xlu0 %v381, 123
    %v568 = vpop.permute.xlu0 %567
    %569 = vrot.lane.b32.xlu0 %v383, 123
    %v570 = vpop.permute.xlu0 %569
    %571 = vrot.lane.b32.xlu0 %v387, 123
    %v572 = vpop.permute.xlu0 %571
    %573 = vrot.lane.b32.xlu0 %v389, 123
    %v574 = vpop.permute.xlu0 %573
    %575 = vrot.lane.b32.xlu0 %v393, 123
    %v576 = vpop.permute.xlu0 %575
    %577 = vrot.lane.b32.xlu0 %v395, 123
    %v578 = vpop.permute.xlu0 %577
    %587 = vrot.lane.b32.xlu0 %v370, 3
    %v588 = vpop.permute.xlu0 %587
    %589 = vrot.lane.b32.xlu0 %v375, 3
    %v590 = vpop.permute.xlu0 %589
    %591 = vrot.lane.b32.xlu0 %v381, 3
    %v592 = vpop.permute.xlu0 %591
    %593 = vrot.lane.b32.xlu0 %v383, 3
    %v594 = vpop.permute.xlu0 %593
    %595 = vrot.lane.b32.xlu0 %v387, 3
    %v596 = vpop.permute.xlu0 %595
    %597 = vrot.lane.b32.xlu0 %v389, 3
    %v598 = vpop.permute.xlu0 %597
    %599 = vrot.lane.b32.xlu0 %v393, 3
    %v600 = vpop.permute.xlu0 %599
    %601 = vrot.lane.b32.xlu0 %v395, 3
    %v602 = vpop.permute.xlu0 %601
    %vm611 = vcmask 23552
    %v612 = vsel %vm611, %v564, %v588
    %v613 = vsel %vm611, %v566, %v590
    %v614 = vsel %vm611, %v568, %v592
    %v615 = vsel %vm611, %v570, %v594
    %v616 = vsel %vm611, %v572, %v596
    %v617 = vsel %vm611, %v574, %v598
    %v618 = vsel %vm611, %v576, %v600
    %v619 = vsel %vm611, %v578, %v602
    %vm620 = vcmp.eq.s32.totalorder %v407, 2
    %vm621 = vcmp.eq.s32.totalorder %v408, 2
    %vm622 = vcmp.eq.s32.totalorder %v409, 2
    %vm623 = vcmp.eq.s32.totalorder %v410, 2
    %vm624 = vcmp.eq.s32.totalorder %v411, 2
    %vm625 = vcmp.eq.s32.totalorder %v412, 2
    %vm626 = vcmp.eq.s32.totalorder %v413, 2
    %vm627 = vcmp.eq.s32.totalorder %v414, 2
    %v628 = vsel %vm620, %v612, %v555
    %v629 = vsel %vm621, %v613, %v556
    %v630 = vsel %vm622, %v614, %v557
    %v631 = vsel %vm623, %v615, %v558
    %v632 = vsel %vm624, %v616, %v559
    %v633 = vsel %vm625, %v617, %v560
    %v634 = vsel %vm626, %v618, %v561
    %v635 = vsel %vm627, %v619, %v562
    %636 = vrot.lane.b32.xlu0 %v370, 124
    %v637 = vpop.permute.xlu0 %636
    %638 = vrot.lane.b32.xlu0 %v375, 124
    %v639 = vpop.permute.xlu0 %638
    %640 = vrot.lane.b32.xlu0 %v381, 124
    %v641 = vpop.permute.xlu0 %640
    %642 = vrot.lane.b32.xlu0 %v383, 124
    %v643 = vpop.permute.xlu0 %642
    %644 = vrot.lane.b32.xlu0 %v387, 124
    %v645 = vpop.permute.xlu0 %644
    %646 = vrot.lane.b32.xlu0 %v389, 124
    %v647 = vpop.permute.xlu0 %646
    %648 = vrot.lane.b32.xlu0 %v393, 124
    %v649 = vpop.permute.xlu0 %648
    %650 = vrot.lane.b32.xlu0 %v395, 124
    %v651 = vpop.permute.xlu0 %650
    %660 = vrot.lane.b32.xlu0 %v370, 4
    %v661 = vpop.permute.xlu0 %660
    %662 = vrot.lane.b32.xlu0 %v375, 4
    %v663 = vpop.permute.xlu0 %662
    %664 = vrot.lane.b32.xlu0 %v381, 4
    %v665 = vpop.permute.xlu0 %664
    %666 = vrot.lane.b32.xlu0 %v383, 4
    %v667 = vpop.permute.xlu0 %666
    %668 = vrot.lane.b32.xlu0 %v387, 4
    %v669 = vpop.permute.xlu0 %668
    %670 = vrot.lane.b32.xlu0 %v389, 4
    %v671 = vpop.permute.xlu0 %670
    %672 = vrot.lane.b32.xlu0 %v393, 4
    %v673 = vpop.permute.xlu0 %672
    %674 = vrot.lane.b32.xlu0 %v395, 4
    %v675 = vpop.permute.xlu0 %674
    %vm684 = vcmask 31744
    %v685 = vsel %vm684, %v637, %v661
    %v686 = vsel %vm684, %v639, %v663
    %v687 = vsel %vm684, %v641, %v665
    %v688 = vsel %vm684, %v643, %v667
    %v689 = vsel %vm684, %v645, %v669
    %v690 = vsel %vm684, %v647, %v671
    %v691 = vsel %vm684, %v649, %v673
    %v692 = vsel %vm684, %v651, %v675
    %vm693 = vcmp.eq.s32.totalorder %v407, 3
    %vm694 = vcmp.eq.s32.totalorder %v408, 3
    %vm695 = vcmp.eq.s32.totalorder %v409, 3
    %vm696 = vcmp.eq.s32.totalorder %v410, 3
    %vm697 = vcmp.eq.s32.totalorder %v411, 3
    %vm698 = vcmp.eq.s32.totalorder %v412, 3
    %vm699 = vcmp.eq.s32.totalorder %v413, 3
    %vm700 = vcmp.eq.s32.totalorder %v414, 3
    %v701 = vsel %vm693, %v685, %v628
    %v702 = vsel %vm694, %v686, %v629
    %v703 = vsel %vm695, %v687, %v630
    %v704 = vsel %vm696, %v688, %v631
    %v705 = vsel %vm697, %v689, %v632
    %v706 = vsel %vm698, %v690, %v633
    %v707 = vsel %vm699, %v691, %v634
    %v708 = vsel %vm700, %v692, %v635
    %709 = vrot.lane.b32.xlu0 %v370, 125
    %v710 = vpop.permute.xlu0 %709
    %711 = vrot.lane.b32.xlu0 %v375, 125
    %v712 = vpop.permute.xlu0 %711
    %713 = vrot.lane.b32.xlu0 %v381, 125
    %v714 = vpop.permute.xlu0 %713
    %715 = vrot.lane.b32.xlu0 %v383, 125
    %v716 = vpop.permute.xlu0 %715
    %717 = vrot.lane.b32.xlu0 %v387, 125
    %v718 = vpop.permute.xlu0 %717
    %719 = vrot.lane.b32.xlu0 %v389, 125
    %v720 = vpop.permute.xlu0 %719
    %721 = vrot.lane.b32.xlu0 %v393, 125
    %v722 = vpop.permute.xlu0 %721
    %723 = vrot.lane.b32.xlu0 %v395, 125
    %v724 = vpop.permute.xlu0 %723
    %733 = vrot.lane.b32.xlu0 %v370, 5
    %v734 = vpop.permute.xlu0 %733
    %735 = vrot.lane.b32.xlu0 %v375, 5
    %v736 = vpop.permute.xlu0 %735
    %737 = vrot.lane.b32.xlu0 %v381, 5
    %v738 = vpop.permute.xlu0 %737
    %739 = vrot.lane.b32.xlu0 %v383, 5
    %v740 = vpop.permute.xlu0 %739
    %741 = vrot.lane.b32.xlu0 %v387, 5
    %v742 = vpop.permute.xlu0 %741
    %743 = vrot.lane.b32.xlu0 %v389, 5
    %v744 = vpop.permute.xlu0 %743
    %745 = vrot.lane.b32.xlu0 %v393, 5
    %v746 = vpop.permute.xlu0 %745
    %747 = vrot.lane.b32.xlu0 %v395, 5
    %v748 = vpop.permute.xlu0 %747
    %vm757 = vcmask 39936
    %v758 = vsel %vm757, %v710, %v734
    %v759 = vsel %vm757, %v712, %v736
    %v760 = vsel %vm757, %v714, %v738
    %v761 = vsel %vm757, %v716, %v740
    %v762 = vsel %vm757, %v718, %v742
    %v763 = vsel %vm757, %v720, %v744
    %v764 = vsel %vm757, %v722, %v746
    %v765 = vsel %vm757, %v724, %v748
    %vm766 = vcmp.eq.s32.totalorder %v407, 4
    %vm767 = vcmp.eq.s32.totalorder %v408, 4
    %vm768 = vcmp.eq.s32.totalorder %v409, 4
    %vm769 = vcmp.eq.s32.totalorder %v410, 4
    %vm770 = vcmp.eq.s32.totalorder %v411, 4
    %vm771 = vcmp.eq.s32.totalorder %v412, 4
    %vm772 = vcmp.eq.s32.totalorder %v413, 4
    %vm773 = vcmp.eq.s32.totalorder %v414, 4
    %v774 = vsel %vm766, %v758, %v701
    %v775 = vsel %vm767, %v759, %v702
    %v776 = vsel %vm768, %v760, %v703
    %v777 = vsel %vm769, %v761, %v704
    %v778 = vsel %vm770, %v762, %v705
    %v779 = vsel %vm771, %v763, %v706
    %v780 = vsel %vm772, %v764, %v707
    %v781 = vsel %vm773, %v765, %v708
    %782 = vrot.lane.b32.xlu0 %v370, 126
    %v783 = vpop.permute.xlu0 %782
    %784 = vrot.lane.b32.xlu0 %v375, 126
    %v785 = vpop.permute.xlu0 %784
    %786 = vrot.lane.b32.xlu0 %v381, 126
    %v787 = vpop.permute.xlu0 %786
    %788 = vrot.lane.b32.xlu0 %v383, 126
    %v789 = vpop.permute.xlu0 %788
    %790 = vrot.lane.b32.xlu0 %v387, 126
    %v791 = vpop.permute.xlu0 %790
    %792 = vrot.lane.b32.xlu0 %v389, 126
    %v793 = vpop.permute.xlu0 %792
    %794 = vrot.lane.b32.xlu0 %v393, 126
    %v795 = vpop.permute.xlu0 %794
    %796 = vrot.lane.b32.xlu0 %v395, 126
    %v797 = vpop.permute.xlu0 %796
    %806 = vrot.lane.b32.xlu0 %v370, 6
    %v807 = vpop.permute.xlu0 %806
    %808 = vrot.lane.b32.xlu0 %v375, 6
    %v809 = vpop.permute.xlu0 %808
    %810 = vrot.lane.b32.xlu0 %v381, 6
    %v811 = vpop.permute.xlu0 %810
    %812 = vrot.lane.b32.xlu0 %v383, 6
    %v813 = vpop.permute.xlu0 %812
    %814 = vrot.lane.b32.xlu0 %v387, 6
    %v815 = vpop.permute.xlu0 %814
    %816 = vrot.lane.b32.xlu0 %v389, 6
    %v817 = vpop.permute.xlu0 %816
    %818 = vrot.lane.b32.xlu0 %v393, 6
    %v819 = vpop.permute.xlu0 %818
    %820 = vrot.lane.b32.xlu0 %v395, 6
    %v821 = vpop.permute.xlu0 %820
    %vm830 = vcmask 48128
    %v831 = vsel %vm830, %v783, %v807
    %v832 = vsel %vm830, %v785, %v809
    %v833 = vsel %vm830, %v787, %v811
    %v834 = vsel %vm830, %v789, %v813
    %v835 = vsel %vm830, %v791, %v815
    %v836 = vsel %vm830, %v793, %v817
    %v837 = vsel %vm830, %v795, %v819
    %v838 = vsel %vm830, %v797, %v821
    %vm839 = vcmp.eq.s32.totalorder %v407, 5
    %vm840 = vcmp.eq.s32.totalorder %v408, 5
    %vm841 = vcmp.eq.s32.totalorder %v409, 5
    %vm842 = vcmp.eq.s32.totalorder %v410, 5
    %vm843 = vcmp.eq.s32.totalorder %v411, 5
    %vm844 = vcmp.eq.s32.totalorder %v412, 5
    %vm845 = vcmp.eq.s32.totalorder %v413, 5
    %vm846 = vcmp.eq.s32.totalorder %v414, 5
    %v847 = vsel %vm839, %v831, %v774
    %v848 = vsel %vm840, %v832, %v775
    %v849 = vsel %vm841, %v833, %v776
    %v850 = vsel %vm842, %v834, %v777
    %v851 = vsel %vm843, %v835, %v778
    %v852 = vsel %vm844, %v836, %v779
    %v853 = vsel %vm845, %v837, %v780
    %v854 = vsel %vm846, %v838, %v781
    %855 = vrot.lane.b32.xlu0 %v370, 127
    %v856 = vpop.permute.xlu0 %855
    %857 = vrot.lane.b32.xlu0 %v375, 127
    %v858 = vpop.permute.xlu0 %857
    %859 = vrot.lane.b32.xlu0 %v381, 127
    %v860 = vpop.permute.xlu0 %859
    %861 = vrot.lane.b32.xlu0 %v383, 127
    %v862 = vpop.permute.xlu0 %861
    %863 = vrot.lane.b32.xlu0 %v387, 127
    %v864 = vpop.permute.xlu0 %863
    %865 = vrot.lane.b32.xlu0 %v389, 127
    %v866 = vpop.permute.xlu0 %865
    %867 = vrot.lane.b32.xlu0 %v393, 127
    %v868 = vpop.permute.xlu0 %867
    %869 = vrot.lane.b32.xlu0 %v395, 127
    %v870 = vpop.permute.xlu0 %869
    %879 = vrot.lane.b32.xlu0 %v370, 7
    %v880 = vpop.permute.xlu0 %879
    %881 = vrot.lane.b32.xlu0 %v375, 7
    %v882 = vpop.permute.xlu0 %881
    %883 = vrot.lane.b32.xlu0 %v381, 7
    %v884 = vpop.permute.xlu0 %883
    %885 = vrot.lane.b32.xlu0 %v383, 7
    %v886 = vpop.permute.xlu0 %885
    %887 = vrot.lane.b32.xlu0 %v387, 7
    %v888 = vpop.permute.xlu0 %887
    %889 = vrot.lane.b32.xlu0 %v389, 7
    %v890 = vpop.permute.xlu0 %889
    %891 = vrot.lane.b32.xlu0 %v393, 7
    %v892 = vpop.permute.xlu0 %891
    %893 = vrot.lane.b32.xlu0 %v395, 7
    %v894 = vpop.permute.xlu0 %893
    %vm903 = vcmask 56320
    %v904 = vsel %vm903, %v856, %v880
    %v905 = vsel %vm903, %v858, %v882
    %v906 = vsel %vm903, %v860, %v884
    %v907 = vsel %vm903, %v862, %v886
    %v908 = vsel %vm903, %v864, %v888
    %v909 = vsel %vm903, %v866, %v890
    %v910 = vsel %vm903, %v868, %v892
    %v911 = vsel %vm903, %v870, %v894
    %vm912 = vcmp.eq.s32.totalorder %v407, 6
    %vm913 = vcmp.eq.s32.totalorder %v408, 6
    %vm914 = vcmp.eq.s32.totalorder %v409, 6
    %vm915 = vcmp.eq.s32.totalorder %v410, 6
    %vm916 = vcmp.eq.s32.totalorder %v411, 6
    %vm917 = vcmp.eq.s32.totalorder %v412, 6
    %vm918 = vcmp.eq.s32.totalorder %v413, 6
    %vm919 = vcmp.eq.s32.totalorder %v414, 6
    %v920 = vsel %vm912, %v904, %v847
    %v921 = vsel %vm913, %v905, %v848
    %v922 = vsel %vm914, %v906, %v849
    %v923 = vsel %vm915, %v907, %v850
    %v924 = vsel %vm916, %v908, %v851
    %v925 = vsel %vm917, %v909, %v852
    %v926 = vsel %vm918, %v910, %v853
    %v927 = vsel %vm919, %v911, %v854
    %vm936 = vcmask 1046528
    %v937 = vrot.slane %v920, 1
    %v938 = vrot.slane %v921, 1
    %v939 = vsel %vm936, %v937, %v938
    %v940 = vrot.slane %v922, 1
    %v941 = vsel %vm936, %v938, %v940
    %v942 = vrot.slane %v923, 1
    %v943 = vsel %vm936, %v940, %v942
    %v944 = vrot.slane %v924, 1
    %v945 = vsel %vm936, %v942, %v944
    %v946 = vrot.slane %v925, 1
    %v947 = vsel %vm936, %v944, %v946
    %v948 = vrot.slane %v926, 1
    %v949 = vsel %vm936, %v946, %v948
    %v950 = vrot.slane %v927, 1
    %v951 = vsel %vm936, %v948, %v950
    %v961 = vsel %vm936, %v950, %v937
    %vm962 = vcmp.le.s32.totalorder %v416, %v407
    %vm963 = vcmp.le.s32.totalorder %v416, %v408
    %vm964 = vcmp.le.s32.totalorder %v416, %v409
    %vm965 = vcmp.le.s32.totalorder %v416, %v410
    %vm966 = vcmp.le.s32.totalorder %v416, %v411
    %vm967 = vcmp.le.s32.totalorder %v416, %v412
    %vm968 = vcmp.le.s32.totalorder %v416, %v413
    %vm969 = vcmp.le.s32.totalorder %v416, %v414
    %v970 = vadd.s32 %v407, 1
    %v971 = vadd.s32 %v408, 1
    %v972 = vadd.s32 %v409, 1
    %v973 = vadd.s32 %v410, 1
    %v974 = vadd.s32 %v411, 1
    %v975 = vadd.s32 %v412, 1
    %v976 = vadd.s32 %v413, 1
    %v977 = vadd.s32 %v414, 1
    %vm978 = vcmp.eq.s32.totalorder %v416, %v970
    %vm979 = vcmp.eq.s32.totalorder %v416, %v971
    %vm980 = vcmp.eq.s32.totalorder %v416, %v972
    %vm981 = vcmp.eq.s32.totalorder %v416, %v973
    %vm982 = vcmp.eq.s32.totalorder %v416, %v974
    %vm983 = vcmp.eq.s32.totalorder %v416, %v975
    %vm984 = vcmp.eq.s32.totalorder %v416, %v976
    %vm985 = vcmp.eq.s32.totalorder %v416, %v977
    %v986 = vsel %vm978, 0.0, %v939
    %v987 = vsel %vm979, 0.0, %v941
    %v988 = vsel %vm980, 0.0, %v943
    %v989 = vsel %vm981, 0.0, %v945
    %v990 = vsel %vm982, 0.0, %v947
    %v991 = vsel %vm983, 0.0, %v949
    %v992 = vsel %vm984, 0.0, %v951
    %v993 = vsel %vm985, 0.0, %v961
    %v994 = vsel %vm962, %v920, %v986
    %v995 = vsel %vm963, %v921, %v987
    %v996 = vsel %vm964, %v922, %v988
    %v997 = vsel %vm965, %v923, %v989
    %v998 = vsel %vm966, %v924, %v990
    %v999 = vsel %vm967, %v925, %v991
    %v1000 = vsel %vm968, %v926, %v992
    %v1001 = vsel %vm969, %v927, %v993
    %v1002 = vand.u32 %v399, 4294967288
    %v1003 = vand.u32 %v400, 4294967288
    %v1004 = vand.u32 %v401, 4294967288
    %v1005 = vand.u32 %v402, 4294967288
    %v1006 = vand.u32 %v403, 4294967288
    %v1007 = vand.u32 %v404, 4294967288
    %v1008 = vand.u32 %v405, 4294967288
    %v1009 = vand.u32 %v406, 4294967288
    %v1010 = vand.u32 %v416, 4294967288
    %vm1011 = vcmp.eq.s32.totalorder %v1002, %v1010
    %vm1012 = vcmp.eq.s32.totalorder %v1003, %v1010
    %vm1013 = vcmp.eq.s32.totalorder %v1004, %v1010
    %vm1014 = vcmp.eq.s32.totalorder %v1005, %v1010
    %vm1015 = vcmp.eq.s32.totalorder %v1006, %v1010
    %vm1016 = vcmp.eq.s32.totalorder %v1007, %v1010
    %vm1017 = vcmp.eq.s32.totalorder %v1008, %v1010
    %vm1018 = vcmp.eq.s32.totalorder %v1009, %v1010
    %1027 = vrot.lane.b32.xlu0 %v994, 8
    %v1028 = vpop.permute.xlu0 %1027
    %1029 = vrot.lane.b32.xlu0 %v995, 8
    %v1030 = vpop.permute.xlu0 %1029
    %1031 = vrot.lane.b32.xlu0 %v996, 8
    %v1032 = vpop.permute.xlu0 %1031
    %1033 = vrot.lane.b32.xlu0 %v997, 8
    %v1034 = vpop.permute.xlu0 %1033
    %1035 = vrot.lane.b32.xlu0 %v998, 8
    %v1036 = vpop.permute.xlu0 %1035
    %1037 = vrot.lane.b32.xlu0 %v999, 8
    %v1038 = vpop.permute.xlu0 %1037
    %1039 = vrot.lane.b32.xlu0 %v1000, 8
    %v1040 = vpop.permute.xlu0 %1039
    %1041 = vrot.lane.b32.xlu0 %v1001, 8
    %v1042 = vpop.permute.xlu0 %1041
    %1051 = vrot.lane.b32.xlu0 %v994, 16
    %v1052 = vpop.permute.xlu0 %1051
    %1053 = vrot.lane.b32.xlu0 %v995, 16
    %v1054 = vpop.permute.xlu0 %1053
    %1055 = vrot.lane.b32.xlu0 %v996, 16
    %v1056 = vpop.permute.xlu0 %1055
    %1057 = vrot.lane.b32.xlu0 %v997, 16
    %v1058 = vpop.permute.xlu0 %1057
    %1059 = vrot.lane.b32.xlu0 %v998, 16
    %v1060 = vpop.permute.xlu0 %1059
    %1061 = vrot.lane.b32.xlu0 %v999, 16
    %v1062 = vpop.permute.xlu0 %1061
    %1063 = vrot.lane.b32.xlu0 %v1000, 16
    %v1064 = vpop.permute.xlu0 %1063
    %1065 = vrot.lane.b32.xlu0 %v1001, 16
    %v1066 = vpop.permute.xlu0 %1065
    %1075 = vrot.lane.b32.xlu0 %v994, 24
    %v1076 = vpop.permute.xlu0 %1075
    %1077 = vrot.lane.b32.xlu0 %v995, 24
    %v1078 = vpop.permute.xlu0 %1077
    %1079 = vrot.lane.b32.xlu0 %v996, 24
    %v1080 = vpop.permute.xlu0 %1079
    %1081 = vrot.lane.b32.xlu0 %v997, 24
    %v1082 = vpop.permute.xlu0 %1081
    %1083 = vrot.lane.b32.xlu0 %v998, 24
    %v1084 = vpop.permute.xlu0 %1083
    %1085 = vrot.lane.b32.xlu0 %v999, 24
    %v1086 = vpop.permute.xlu0 %1085
    %1087 = vrot.lane.b32.xlu0 %v1000, 24
    %v1088 = vpop.permute.xlu0 %1087
    %1089 = vrot.lane.b32.xlu0 %v1001, 24
    %v1090 = vpop.permute.xlu0 %1089
    %1099 = vrot.lane.b32.xlu0 %v994, 32
    %v1100 = vpop.permute.xlu0 %1099
    %1101 = vrot.lane.b32.xlu0 %v995, 32
    %v1102 = vpop.permute.xlu0 %1101
    %1103 = vrot.lane.b32.xlu0 %v996, 32
    %v1104 = vpop.permute.xlu0 %1103
    %1105 = vrot.lane.b32.xlu0 %v997, 32
    %v1106 = vpop.permute.xlu0 %1105
    %1107 = vrot.lane.b32.xlu0 %v998, 32
    %v1108 = vpop.permute.xlu0 %1107
    %1109 = vrot.lane.b32.xlu0 %v999, 32
    %v1110 = vpop.permute.xlu0 %1109
    %1111 = vrot.lane.b32.xlu0 %v1000, 32
    %v1112 = vpop.permute.xlu0 %1111
    %1113 = vrot.lane.b32.xlu0 %v1001, 32
    %v1114 = vpop.permute.xlu0 %1113
    %1123 = vrot.lane.b32.xlu0 %v994, 40
    %v1124 = vpop.permute.xlu0 %1123
    %1125 = vrot.lane.b32.xlu0 %v995, 40
    %v1126 = vpop.permute.xlu0 %1125
    %1127 = vrot.lane.b32.xlu0 %v996, 40
    %v1128 = vpop.permute.xlu0 %1127
    %1129 = vrot.lane.b32.xlu0 %v997, 40
    %v1130 = vpop.permute.xlu0 %1129
    %1131 = vrot.lane.b32.xlu0 %v998, 40
    %v1132 = vpop.permute.xlu0 %1131
    %1133 = vrot.lane.b32.xlu0 %v999, 40
    %v1134 = vpop.permute.xlu0 %1133
    %1135 = vrot.lane.b32.xlu0 %v1000, 40
    %v1136 = vpop.permute.xlu0 %1135
    %1137 = vrot.lane.b32.xlu0 %v1001, 40
    %v1138 = vpop.permute.xlu0 %1137
    %1147 = vrot.lane.b32.xlu0 %v994, 48
    %v1148 = vpop.permute.xlu0 %1147
    %1149 = vrot.lane.b32.xlu0 %v995, 48
    %v1150 = vpop.permute.xlu0 %1149
    %1151 = vrot.lane.b32.xlu0 %v996, 48
    %v1152 = vpop.permute.xlu0 %1151
    %1153 = vrot.lane.b32.xlu0 %v997, 48
    %v1154 = vpop.permute.xlu0 %1153
    %1155 = vrot.lane.b32.xlu0 %v998, 48
    %v1156 = vpop.permute.xlu0 %1155
    %1157 = vrot.lane.b32.xlu0 %v999, 48
    %v1158 = vpop.permute.xlu0 %1157
    %1159 = vrot.lane.b32.xlu0 %v1000, 48
    %v1160 = vpop.permute.xlu0 %1159
    %1161 = vrot.lane.b32.xlu0 %v1001, 48
    %v1162 = vpop.permute.xlu0 %1161
    %1171 = vrot.lane.b32.xlu0 %v994, 56
    %v1172 = vpop.permute.xlu0 %1171
    %1173 = vrot.lane.b32.xlu0 %v995, 56
    %v1174 = vpop.permute.xlu0 %1173
    %1175 = vrot.lane.b32.xlu0 %v996, 56
    %v1176 = vpop.permute.xlu0 %1175
    %1177 = vrot.lane.b32.xlu0 %v997, 56
    %v1178 = vpop.permute.xlu0 %1177
    %1179 = vrot.lane.b32.xlu0 %v998, 56
    %v1180 = vpop.permute.xlu0 %1179
    %1181 = vrot.lane.b32.xlu0 %v999, 56
    %v1182 = vpop.permute.xlu0 %1181
    %1183 = vrot.lane.b32.xlu0 %v1000, 56
    %v1184 = vpop.permute.xlu0 %1183
    %1185 = vrot.lane.b32.xlu0 %v1001, 56
    %v1186 = vpop.permute.xlu0 %1185
    %vm1195 = vcmask 64512
    %v1196 = vsel %vm1195, %v994, %v1028
    %v1197 = vsel %vm1195, %v995, %v1030
    %v1198 = vsel %vm1195, %v996, %v1032
    %v1199 = vsel %vm1195, %v997, %v1034
    %v1200 = vsel %vm1195, %v998, %v1036
    %v1201 = vsel %vm1195, %v999, %v1038
    %v1202 = vsel %vm1195, %v1000, %v1040
    %v1203 = vsel %vm1195, %v1001, %v1042
    %vm1204 = vcmask 130048
    %v1205 = vsel %vm1204, %v1196, %v1052
    %v1206 = vsel %vm1204, %v1197, %v1054
    %v1207 = vsel %vm1204, %v1198, %v1056
    %v1208 = vsel %vm1204, %v1199, %v1058
    %v1209 = vsel %vm1204, %v1200, %v1060
    %v1210 = vsel %vm1204, %v1201, %v1062
    %v1211 = vsel %vm1204, %v1202, %v1064
    %v1212 = vsel %vm1204, %v1203, %v1066
    %vm1213 = vcmask 195584
    %v1214 = vsel %vm1213, %v1205, %v1076
    %v1215 = vsel %vm1213, %v1206, %v1078
    %v1216 = vsel %vm1213, %v1207, %v1080
    %v1217 = vsel %vm1213, %v1208, %v1082
    %v1218 = vsel %vm1213, %v1209, %v1084
    %v1219 = vsel %vm1213, %v1210, %v1086
    %v1220 = vsel %vm1213, %v1211, %v1088
    %v1221 = vsel %vm1213, %v1212, %v1090
    %v1222 = vsel %vm90, %v1214, %v1100
    %v1223 = vsel %vm90, %v1215, %v1102
    %v1224 = vsel %vm90, %v1216, %v1104
    %v1225 = vsel %vm90, %v1217, %v1106
    %v1226 = vsel %vm90, %v1218, %v1108
    %v1227 = vsel %vm90, %v1219, %v1110
    %v1228 = vsel %vm90, %v1220, %v1112
    %v1229 = vsel %vm90, %v1221, %v1114
    %vm1230 = vcmask 326656
    %v1231 = vsel %vm1230, %v1222, %v1124
    %v1232 = vsel %vm1230, %v1223, %v1126
    %v1233 = vsel %vm1230, %v1224, %v1128
    %v1234 = vsel %vm1230, %v1225, %v1130
    %v1235 = vsel %vm1230, %v1226, %v1132
    %v1236 = vsel %vm1230, %v1227, %v1134
    %v1237 = vsel %vm1230, %v1228, %v1136
    %v1238 = vsel %vm1230, %v1229, %v1138
    %vm1239 = vcmask 392192
    %v1240 = vsel %vm1239, %v1231, %v1148
    %v1241 = vsel %vm1239, %v1232, %v1150
    %v1242 = vsel %vm1239, %v1233, %v1152
    %v1243 = vsel %vm1239, %v1234, %v1154
    %v1244 = vsel %vm1239, %v1235, %v1156
    %v1245 = vsel %vm1239, %v1236, %v1158
    %v1246 = vsel %vm1239, %v1237, %v1160
    %v1247 = vsel %vm1239, %v1238, %v1162
    %vm1248 = vcmask 457728
    %v1249 = vsel %vm1248, %v1240, %v1172
    %v1250 = vsel %vm1248, %v1241, %v1174
    %v1251 = vsel %vm1248, %v1242, %v1176
    %v1252 = vsel %vm1248, %v1243, %v1178
    %v1253 = vsel %vm1248, %v1244, %v1180
    %v1254 = vsel %vm1248, %v1245, %v1182
    %v1255 = vsel %vm1248, %v1246, %v1184
    %v1256 = vsel %vm1248, %v1247, %v1186
    %1257 = vrot.lane.b32.xlu0 %v245, 96
    %v1258 = vpop.permute.xlu0 %1257
    %1259 = vrot.lane.b32.xlu0 %v250, 96
    %v1260 = vpop.permute.xlu0 %1259
    %1261 = vrot.lane.b32.xlu0 %v282, 96
    %v1262 = vpop.permute.xlu0 %1261
    %1263 = vrot.lane.b32.xlu0 %v284, 96
    %v1264 = vpop.permute.xlu0 %1263
    %1265 = vrot.lane.b32.xlu0 %v286, 96
    %v1266 = vpop.permute.xlu0 %1265
    %1267 = vrot.lane.b32.xlu0 %v288, 96
    %v1268 = vpop.permute.xlu0 %1267
    %1269 = vrot.lane.b32.xlu0 %v290, 96
    %v1270 = vpop.permute.xlu0 %1269
    %1271 = vrot.lane.b32.xlu0 %v292, 96
    %v1272 = vpop.permute.xlu0 %1271
    %v1273 = vsel %vm1195, %v257, 0
    %v1275 = vsel %vm1195, %v258, 0
    %v1277 = vsel %vm1195, %v268, 0
    %v1279 = vsel %vm1195, %v270, 0
    %v1281 = vsel %vm1195, %v272, 0
    %v1283 = vsel %vm1195, %v274, 0
    %v1285 = vsel %vm1195, %v276, 0
    %v1287 = vsel %vm1195, %v278, 0
    %v1289 = vsel %vm1195, %v1258, 0
    %v1291 = vsel %vm1195, %v1260, 0
    %v1293 = vsel %vm1195, %v1262, 0
    %v1295 = vsel %vm1195, %v1264, 0
    %v1297 = vsel %vm1195, %v1266, 0
    %v1299 = vsel %vm1195, %v1268, 0
    %v1301 = vsel %vm1195, %v1270, 0
    %v1303 = vsel %vm1195, %v1272, 0
    %1305 = vmatprep.subr.mxu0 0.0
    %1306 = vmatpush1.xpose.msra.mxu0 %v1289
    %1307 = vmatprep.subr.mxu0 0.0
    %1308 = vmatpush1.xpose.msra.mxu0 %v1291
    %1309 = vmatprep.subr.mxu0 0.0
    %1310 = vmatpush1.xpose.msra.mxu0 %v1293
    %1311 = vmatprep.subr.mxu0 0.0
    %1312 = vmatpush1.xpose.msra.mxu0 %v1295
    %1313 = vmatprep.subr.mxu0 0.0
    %1314 = vmatpush1.xpose.msra.mxu0 %v1297
    %1315 = vmatprep.subr.mxu0 0.0
    %1316 = vmatpush1.xpose.msra.mxu0 %v1299
    %1317 = vmatprep.subr.mxu0 0.0
    %1318 = vmatpush1.xpose.msra.mxu0 %v1301
    %1319 = vmatprep.subr.mxu0 0.0
    %1320 = vmatpush1.xpose.msra.mxu0 %v1303
    %1321 = vmatprep.subr.mxu0 0.0
    %1322 = vmatpush1.xpose.msra.mxu0 0.0
    %1323 = vmatprep.subr.mxu0 0.0
    %1324 = vmatpush1.xpose.msra.mxu0 0.0
    %1325 = vmatprep.subr.mxu0 0.0
    %1326 = vmatpush1.xpose.msra.mxu0 0.0
    %1327 = vmatprep.subr.mxu0 0.0
    %1328 = vmatpush1.xpose.msra.mxu0 0.0
    %1329 = vmatprep.subr.mxu0 0.0
    %1330 = vmatpush1.xpose.msra.mxu0 0.0
    %1331 = vmatprep.subr.mxu0 0.0
    %1332 = vmatpush1.xpose.msra.mxu0 0.0
    %1333 = vmatprep.subr.mxu0 0.0
    %1334 = vmatpush1.xpose.msra.mxu0 0.0
    %1335 = vmatprep.subr.mxu0 0.0
    %1336 = vmatpush1.xpose.msra.mxu0 0.0
    %1337 = vmatprep.subr.mxu0 0.0
    %1338 = vmatpush1.xpose.msra.mxu0 0.0
    %1339 = vmatprep.subr.mxu0 0.0
    %1340 = vmatpush1.xpose.msra.mxu0 0.0
    %1341 = vmatprep.subr.mxu0 0.0
    %1342 = vmatpush1.xpose.msra.mxu0 0.0
    %1343 = vmatprep.subr.mxu0 0.0
    %1344 = vmatpush1.xpose.msra.mxu0 0.0
    %1345 = vmatprep.subr.mxu0 0.0
    %1346 = vmatpush1.xpose.msra.mxu0 0.0
    %1347 = vmatprep.subr.mxu0 0.0
    %1348 = vmatpush1.xpose.msra.mxu0 0.0
    %1349 = vmatprep.subr.mxu0 0.0
    %1350 = vmatpush1.xpose.msra.mxu0 0.0
    %1351 = vmatprep.subr.mxu0 0.0
    %1352 = vmatpush1.xpose.msra.mxu0 0.0
    %1353 = vmatprep.subr.mxu0 0.0
    %1354 = vmatpush1.xpose.msra.mxu0 0.0
    %1355 = vmatprep.subr.mxu0 0.0
    %1356 = vmatpush1.xpose.msra.mxu0 0.0
    %1357 = vmatprep.subr.mxu0 0.0
    %1358 = vmatpush1.xpose.msra.mxu0 0.0
    %1359 = vmatprep.subr.mxu0 0.0
    %1360 = vmatpush1.xpose.msra.mxu0 0.0
    %1361 = vmatprep.subr.mxu0 0.0
    %1362 = vmatpush1.xpose.msra.mxu0 0.0
    %1363 = vmatprep.subr.mxu0 0.0
    %1364 = vmatpush1.xpose.msra.mxu0 0.0
    %1365 = vmatprep.subr.mxu0 0.0
    %1366 = vmatpush1.xpose.msra.mxu0 0.0
    %1367 = vmatprep.subr.mxu0 0.0
    %1368 = vmatpush1.xpose.msra.mxu0 0.0
    %1369 = vmatprep.mubr.f32.mxu0 0.0
    %1370 = vmatmul.mubr.f32.gmra.mrb[0].mxu0 %v1273
    %v1371 = vpop.f32.mrb[0].mxu0
    %v1372 = vadd.f32 %v1249, %v1371
    %v1373 = vpop.f32.mrb[0].mxu0
    %1374 = vmatprep.mubr.f32.mxu0 0.0
    %1375 = vmatmul.mubr.f32.gmra.mrb[0].mxu0 %v1275
    %v1376 = vpop.f32.mrb[0].mxu0
    %v1377 = vadd.f32 %v1250, %v1376
    %v1378 = vpop.f32.mrb[0].mxu0
    %1379 = vmatprep.mubr.f32.mxu0 0.0
    %1380 = vmatmul.mubr.f32.gmra.mrb[0].mxu0 %v1277
    %v1381 = vpop.f32.mrb[0].mxu0
    %v1382 = vadd.f32 %v1251, %v1381
    %v1383 = vpop.f32.mrb[0].mxu0
    %1384 = vmatprep.mubr.f32.mxu0 0.0
    %1385 = vmatmul.mubr.f32.gmra.mrb[0].mxu0 %v1279
    %v1386 = vpop.f32.mrb[0].mxu0
    %v1387 = vadd.f32 %v1252, %v1386
    %v1388 = vpop.f32.mrb[0].mxu0
    %1389 = vmatprep.mubr.f32.mxu0 0.0
    %1390 = vmatmul.mubr.f32.gmra.mrb[0].mxu0 %v1281
    %v1391 = vpop.f32.mrb[0].mxu0
    %v1392 = vadd.f32 %v1253, %v1391
    %v1393 = vpop.f32.mrb[0].mxu0
    %1394 = vmatprep.mubr.f32.mxu0 0.0
    %1395 = vmatmul.mubr.f32.gmra.mrb[0].mxu0 %v1283
    %v1396 = vpop.f32.mrb[0].mxu0
    %v1397 = vadd.f32 %v1254, %v1396
    %v1398 = vpop.f32.mrb[0].mxu0
    %1399 = vmatprep.mubr.f32.mxu0 0.0
    %1400 = vmatmul.mubr.f32.gmra.mrb[0].mxu0 %v1285
    %v1401 = vpop.f32.mrb[0].mxu0
    %v1402 = vadd.f32 %v1255, %v1401
    %v1403 = vpop.f32.mrb[0].mxu0
    %1404 = vmatprep.mubr.f32.mxu0 0.0
    %1405 = vmatmul.mubr.f32.gmra.mrb[0].mxu0 %v1287
    %v1406 = vpop.f32.mrb[0].mxu0
    %v1407 = vadd.f32 %v1256, %v1406
    %v1408 = vpop.f32.mrb[0].mxu0
    %1409 = vdwg.mxu0
    %v1410 = vmul.f32 %v1372, 0.35355338
    %v1411 = vmul.f32 %v1377, 0.35355338
    %v1412 = vmul.f32 %v1382, 0.35355338
    %v1413 = vmul.f32 %v1387, 0.35355338
    %v1414 = vmul.f32 %v1392, 0.35355338
    %v1415 = vmul.f32 %v1397, 0.35355338
    %v1416 = vmul.f32 %v1402, 0.35355338
    %v1417 = vmul.f32 %v1407, 0.35355338
    %v1418 = vsel %vm1011, %v1410, -1e+30
    %v1419 = vsel %vm1012, %v1411, -1e+30
    %v1420 = vsel %vm1013, %v1412, -1e+30
    %v1421 = vsel %vm1014, %v1413, -1e+30
    %v1422 = vsel %vm1015, %v1414, -1e+30
    %v1423 = vsel %vm1016, %v1415, -1e+30
    %v1424 = vsel %vm1017, %v1416, -1e+30
    %v1425 = vsel %vm1018, %v1417, -1e+30
    %vm1426 = vcmask 523264
    %v1427 = vsel %vm1426, %v1418, -inf
    %1428 = vmax.xlane.f32.xlu0 %v1427
    %v1429 = vpop.xlane.xlu0 %1428
    %v1430 = vsel %vm1426, %v1419, -inf
    %1431 = vmax.xlane.f32.xlu0 %v1430
    %v1432 = vpop.xlane.xlu0 %1431
    %v1433 = vsel %vm1426, %v1420, -inf
    %1434 = vmax.xlane.f32.xlu0 %v1433
    %v1435 = vpop.xlane.xlu0 %1434
    %v1436 = vsel %vm1426, %v1421, -inf
    %1437 = vmax.xlane.f32.xlu0 %v1436
    %v1438 = vpop.xlane.xlu0 %1437
    %v1439 = vsel %vm1426, %v1422, -inf
    %1440 = vmax.xlane.f32.xlu0 %v1439
    %v1441 = vpop.xlane.xlu0 %1440
    %v1442 = vsel %vm1426, %v1423, -inf
    %1443 = vmax.xlane.f32.xlu0 %v1442
    %v1444 = vpop.xlane.xlu0 %1443
    %v1445 = vsel %vm1426, %v1424, -inf
    %1446 = vmax.xlane.f32.xlu0 %v1445
    %v1447 = vpop.xlane.xlu0 %1446
    %v1448 = vsel %vm1426, %v1425, -inf
    %1449 = vmax.xlane.f32.xlu0 %v1448
    %v1450 = vpop.xlane.xlu0 %1449
    %v1451 = vsub.f32 %v1418, %v1429
    %v1452 = vsub.f32 %v1419, %v1432
    %v1453 = vsub.f32 %v1420, %v1435
    %v1454 = vsub.f32 %v1421, %v1438
    %v1455 = vsub.f32 %v1422, %v1441
    %v1456 = vsub.f32 %v1423, %v1444
    %v1457 = vsub.f32 %v1424, %v1447
    %v1458 = vsub.f32 %v1425, %v1450
    %v1459 = vmul.f32 %v1451, 1.442695
    %v1460 = vpow.pop %v1459
    %v1461 = vmul.f32 %v1452, 1.442695
    %v1462 = vpow.pop %v1461
    %v1463 = vmul.f32 %v1453, 1.442695
    %v1464 = vpow.pop %v1463
    %v1465 = vmul.f32 %v1454, 1.442695
    %v1466 = vpow.pop %v1465
    %v1467 = vmul.f32 %v1455, 1.442695
    %v1468 = vpow.pop %v1467
    %v1469 = vmul.f32 %v1456, 1.442695
    %v1470 = vpow.pop %v1469
    %v1471 = vmul.f32 %v1457, 1.442695
    %v1472 = vpow.pop %v1471
    %v1473 = vmul.f32 %v1458, 1.442695
    %v1474 = vpow.pop %v1473
    %v1475 = vsel %vm1426, %v1460, 0.0
    %1476 = vadd.xlane.f32.xlu0 %v1475
    %v1477 = vpop.xlane.xlu0 %1476
    %v1478 = vsel %vm1426, %v1462, 0.0
    %1479 = vadd.xlane.f32.xlu0 %v1478
    %v1480 = vpop.xlane.xlu0 %1479
    %v1481 = vsel %vm1426, %v1464, 0.0
    %1482 = vadd.xlane.f32.xlu0 %v1481
    %v1483 = vpop.xlane.xlu0 %1482
    %v1484 = vsel %vm1426, %v1466, 0.0
    %1485 = vadd.xlane.f32.xlu0 %v1484
    %v1486 = vpop.xlane.xlu0 %1485
    %v1487 = vsel %vm1426, %v1468, 0.0
    %1488 = vadd.xlane.f32.xlu0 %v1487
    %v1489 = vpop.xlane.xlu0 %1488
    %v1490 = vsel %vm1426, %v1470, 0.0
    %1491 = vadd.xlane.f32.xlu0 %v1490
    %v1492 = vpop.xlane.xlu0 %1491
    %v1493 = vsel %vm1426, %v1472, 0.0
    %1494 = vadd.xlane.f32.xlu0 %v1493
    %v1495 = vpop.xlane.xlu0 %1494
    %v1496 = vsel %vm1426, %v1474, 0.0
    %1497 = vadd.xlane.f32.xlu0 %v1496
    %v1498 = vpop.xlane.xlu0 %1497
    %v1499 = vrcp.pop %v1477
    %v1500 = vrcp.pop %v1480
    %v1501 = vrcp.pop %v1483
    %v1502 = vrcp.pop %v1486
    %v1503 = vrcp.pop %v1489
    %v1504 = vrcp.pop %v1492
    %v1505 = vrcp.pop %v1495
    %v1506 = vrcp.pop %v1498
    %v1507 = vmul.f32 %v1460, %v1499
    %v1508 = vmul.f32 %v1462, %v1500
    %v1509 = vmul.f32 %v1464, %v1501
    %v1510 = vmul.f32 %v1466, %v1502
    %v1511 = vmul.f32 %v1468, %v1503
    %v1512 = vmul.f32 %v1470, %v1504
    %v1513 = vmul.f32 %v1472, %v1505
    %v1514 = vmul.f32 %v1474, %v1506
    %1515 = vrot.lane.b32.xlu0 %v245, 64
    %v1516 = vpop.permute.xlu0 %1515
    %1517 = vrot.lane.b32.xlu0 %v250, 64
    %v1518 = vpop.permute.xlu0 %1517
    %1519 = vrot.lane.b32.xlu0 %v282, 64
    %v1520 = vpop.permute.xlu0 %1519
    %1521 = vrot.lane.b32.xlu0 %v284, 64
    %v1522 = vpop.permute.xlu0 %1521
    %1523 = vrot.lane.b32.xlu0 %v286, 64
    %v1524 = vpop.permute.xlu0 %1523
    %1525 = vrot.lane.b32.xlu0 %v288, 64
    %v1526 = vpop.permute.xlu0 %1525
    %1527 = vrot.lane.b32.xlu0 %v290, 64
    %v1528 = vpop.permute.xlu0 %1527
    %1529 = vrot.lane.b32.xlu0 %v292, 64
    %v1530 = vpop.permute.xlu0 %1529
    %v1540 = vsel %vm1426, %v1507, 0
    %v1543 = vsel %vm1426, %v1508, 0
    %v1546 = vsel %vm1426, %v1509, 0
    %v1549 = vsel %vm1426, %v1510, 0
    %v1552 = vsel %vm1426, %v1511, 0
    %v1555 = vsel %vm1426, %v1512, 0
    %v1558 = vsel %vm1426, %v1513, 0
    %v1561 = vsel %vm1426, %v1514, 0
    %1563 = vmatprep.subr.mxu0 0.0
    %1564 = vmatpush1.msra.mxu0 %v1516
    %1565 = vmatprep.subr.mxu0 0.0
    %1566 = vmatpush1.msra.mxu0 %v1518
    %1567 = vmatprep.subr.mxu0 0.0
    %1568 = vmatpush1.msra.mxu0 %v1520
    %1569 = vmatprep.subr.mxu0 0.0
    %1570 = vmatpush1.msra.mxu0 %v1522
    %1571 = vmatprep.subr.mxu0 0.0
    %1572 = vmatpush1.msra.mxu0 %v1524
    %1573 = vmatprep.subr.mxu0 0.0
    %1574 = vmatpush1.msra.mxu0 %v1526
    %1575 = vmatprep.subr.mxu0 0.0
    %1576 = vmatpush1.msra.mxu0 %v1528
    %1577 = vmatprep.subr.mxu0 0.0
    %1578 = vmatpush1.msra.mxu0 %v1530
    %1579 = vmatprep.subr.mxu0 0.0
    %1580 = vmatpush1.msra.mxu0 0.0
    %1581 = vmatprep.subr.mxu0 0.0
    %1582 = vmatpush1.msra.mxu0 0.0
    %1583 = vmatprep.subr.mxu0 0.0
    %1584 = vmatpush1.msra.mxu0 0.0
    %1585 = vmatprep.subr.mxu0 0.0
    %1586 = vmatpush1.msra.mxu0 0.0
    %1587 = vmatprep.subr.mxu0 0.0
    %1588 = vmatpush1.msra.mxu0 0.0
    %1589 = vmatprep.subr.mxu0 0.0
    %1590 = vmatpush1.msra.mxu0 0.0
    %1591 = vmatprep.subr.mxu0 0.0
    %1592 = vmatpush1.msra.mxu0 0.0
    %1593 = vmatprep.subr.mxu0 0.0
    %1594 = vmatpush1.msra.mxu0 0.0
    %1595 = vmatprep.subr.mxu0 0.0
    %1596 = vmatpush1.msra.mxu0 0.0
    %1597 = vmatprep.subr.mxu0 0.0
    %1598 = vmatpush1.msra.mxu0 0.0
    %1599 = vmatprep.subr.mxu0 0.0
    %1600 = vmatpush1.msra.mxu0 0.0
    %1601 = vmatprep.subr.mxu0 0.0
    %1602 = vmatpush1.msra.mxu0 0.0
    %1603 = vmatprep.subr.mxu0 0.0
    %1604 = vmatpush1.msra.mxu0 0.0
    %1605 = vmatprep.subr.mxu0 0.0
    %1606 = vmatpush1.msra.mxu0 0.0
    %1607 = vmatprep.subr.mxu0 0.0
    %1608 = vmatpush1.msra.mxu0 0.0
    %1609 = vmatprep.subr.mxu0 0.0
    %1610 = vmatpush1.msra.mxu0 0.0
    %1611 = vmatprep.subr.mxu0 0.0
    %1612 = vmatpush1.msra.mxu0 0.0
    %1613 = vmatprep.subr.mxu0 0.0
    %1614 = vmatpush1.msra.mxu0 0.0
    %1615 = vmatprep.subr.mxu0 0.0
    %1616 = vmatpush1.msra.mxu0 0.0
    %1617 = vmatprep.subr.mxu0 0.0
    %1618 = vmatpush1.msra.mxu0 0.0
    %1619 = vmatprep.subr.mxu0 0.0
    %1620 = vmatpush1.msra.mxu0 0.0
    %1621 = vmatprep.subr.mxu0 0.0
    %1622 = vmatpush1.msra.mxu0 0.0
    %1623 = vmatprep.subr.mxu0 0.0
    %1624 = vmatpush1.msra.mxu0 0.0
    %1625 = vmatprep.subr.mxu0 0.0
    %1626 = vmatpush1.msra.mxu0 0.0
    %1627 = vmatprep.mubr.f32.mxu0 0.0
    %1628 = vmatmul.mubr.f32.gmra.mrb[0].mxu0 %v1540
    %v1629 = vpop.f32.mrb[0].mxu0
    %v1630 = vadd.f32 0.0, %v1629
    %v1631 = vpop.f32.mrb[0].mxu0
    %1632 = vmatprep.mubr.f32.mxu0 0.0
    %1633 = vmatmul.mubr.f32.gmra.mrb[0].mxu0 %v1543
    %v1634 = vpop.f32.mrb[0].mxu0
    %v1635 = vadd.f32 0.0, %v1634
    %v1636 = vpop.f32.mrb[0].mxu0
    %1637 = vmatprep.mubr.f32.mxu0 0.0
    %1638 = vmatmul.mubr.f32.gmra.mrb[0].mxu0 %v1546
    %v1639 = vpop.f32.mrb[0].mxu0
    %v1640 = vadd.f32 0.0, %v1639
    %v1641 = vpop.f32.mrb[0].mxu0
    %1642 = vmatprep.mubr.f32.mxu0 0.0
    %1643 = vmatmul.mubr.f32.gmra.mrb[0].mxu0 %v1549
    %v1644 = vpop.f32.mrb[0].mxu0
    %v1645 = vadd.f32 0.0, %v1644
    %v1646 = vpop.f32.mrb[0].mxu0
    %1647 = vmatprep.mubr.f32.mxu0 0.0
    %1648 = vmatmul.mubr.f32.gmra.mrb[0].mxu0 %v1552
    %v1649 = vpop.f32.mrb[0].mxu0
    %v1650 = vadd.f32 0.0, %v1649
    %v1651 = vpop.f32.mrb[0].mxu0
    %1652 = vmatprep.mubr.f32.mxu0 0.0
    %1653 = vmatmul.mubr.f32.gmra.mrb[0].mxu0 %v1555
    %v1654 = vpop.f32.mrb[0].mxu0
    %v1655 = vadd.f32 0.0, %v1654
    %v1656 = vpop.f32.mrb[0].mxu0
    %1657 = vmatprep.mubr.f32.mxu0 0.0
    %1658 = vmatmul.mubr.f32.gmra.mrb[0].mxu0 %v1558
    %v1659 = vpop.f32.mrb[0].mxu0
    %v1660 = vadd.f32 0.0, %v1659
    %v1661 = vpop.f32.mrb[0].mxu0
    %1662 = vmatprep.mubr.f32.mxu0 0.0
    %1663 = vmatmul.mubr.f32.gmra.mrb[0].mxu0 %v1561
    %v1664 = vpop.f32.mrb[0].mxu0
    %v1665 = vadd.f32 0.0, %v1664
    %v1666 = vpop.f32.mrb[0].mxu0
    %1667 = vdwg.mxu0
    %1670 = vrot.lane.b32.xlu0 %v1640, 8
    %v1671 = vpop.permute.xlu0 %1670
    %1672 = vrot.lane.b32.xlu0 %v1645, 8
    %v1673 = vpop.permute.xlu0 %1672
    %1678 = vrot.lane.b32.xlu0 %v1650, 16
    %v1679 = vpop.permute.xlu0 %1678
    %1680 = vrot.lane.b32.xlu0 %v1655, 16
    %v1681 = vpop.permute.xlu0 %1680
    %1686 = vrot.lane.b32.xlu0 %v1660, 24
    %v1687 = vpop.permute.xlu0 %1686
    %1688 = vrot.lane.b32.xlu0 %v1665, 24
    %v1689 = vpop.permute.xlu0 %1688
    %v1692 = vsel %vm1195, %v1630, %v1671
    %v1693 = vsel %vm1195, %v1635, %v1673
    %v1694 = vsel %vm1204, %v1692, %v1679
    %v1695 = vsel %vm1204, %v1693, %v1681
    %v1696 = vsel %vm1213, %v1694, %v1687
    %v1697 = vsel %vm1213, %v1695, %v1689
    %v1698 = vld [vmem:[#allocation10] sm:$0xff]
    %v1699 = vld [vmem:[#allocation10 + $0x8] sm:$0xff]
    %v1700 = vld [vmem:[#allocation10 + $0x10] sm:$0xff]
    %v1701 = vld [vmem:[#allocation10 + $0x18] sm:$0xff]
    %v1702 = vlaneseq
    %v1703 = vshrl.u32 %v1702, 7
    %v1704 = vsub.s32 4, %v1703
    %v1705 = vrot.slane %v89, %v1704
    %v1707 = vsel %vm90, %v1696, 0
    %v1710 = vsel %vm90, %v1697, 0
    %1712 = vmatprep.subr.mxu0 0.0
    %1713 = vmatpush1.msra.mxu0 %v1698
    %1714 = vmatprep.subr.mxu0 0.0
    %1715 = vmatpush1.msra.mxu0 %v1699
    %1716 = vmatprep.subr.mxu0 0.0
    %1717 = vmatpush1.msra.mxu0 %v1700
    %1718 = vmatprep.subr.mxu0 0.0
    %1719 = vmatpush1.msra.mxu0 %v1701
    %1720 = vmatprep.subr.mxu0 0.0
    %1721 = vmatpush1.msra.mxu0 0.0
    %1722 = vmatprep.subr.mxu0 0.0
    %1723 = vmatpush1.msra.mxu0 0.0
    %1724 = vmatprep.subr.mxu0 0.0
    %1725 = vmatpush1.msra.mxu0 0.0
    %1726 = vmatprep.subr.mxu0 0.0
    %1727 = vmatpush1.msra.mxu0 0.0
    %1728 = vmatprep.subr.mxu0 0.0
    %1729 = vmatpush1.msra.mxu0 0.0
    %1730 = vmatprep.subr.mxu0 0.0
    %1731 = vmatpush1.msra.mxu0 0.0
    %1732 = vmatprep.subr.mxu0 0.0
    %1733 = vmatpush1.msra.mxu0 0.0
    %1734 = vmatprep.subr.mxu0 0.0
    %1735 = vmatpush1.msra.mxu0 0.0
    %1736 = vmatprep.subr.mxu0 0.0
    %1737 = vmatpush1.msra.mxu0 0.0
    %1738 = vmatprep.subr.mxu0 0.0
    %1739 = vmatpush1.msra.mxu0 0.0
    %1740 = vmatprep.subr.mxu0 0.0
    %1741 = vmatpush1.msra.mxu0 0.0
    %1742 = vmatprep.subr.mxu0 0.0
    %1743 = vmatpush1.msra.mxu0 0.0
    %1744 = vmatprep.subr.mxu0 0.0
    %1745 = vmatpush1.msra.mxu0 0.0
    %1746 = vmatprep.subr.mxu0 0.0
    %1747 = vmatpush1.msra.mxu0 0.0
    %1748 = vmatprep.subr.mxu0 0.0
    %1749 = vmatpush1.msra.mxu0 0.0
    %1750 = vmatprep.subr.mxu0 0.0
    %1751 = vmatpush1.msra.mxu0 0.0
    %1752 = vmatprep.subr.mxu0 0.0
    %1753 = vmatpush1.msra.mxu0 0.0
    %1754 = vmatprep.subr.mxu0 0.0
    %1755 = vmatpush1.msra.mxu0 0.0
    %1756 = vmatprep.subr.mxu0 0.0
    %1757 = vmatpush1.msra.mxu0 0.0
    %1758 = vmatprep.subr.mxu0 0.0
    %1759 = vmatpush1.msra.mxu0 0.0
    %1760 = vmatprep.subr.mxu0 0.0
    %1761 = vmatpush1.msra.mxu0 0.0
    %1762 = vmatprep.subr.mxu0 0.0
    %1763 = vmatpush1.msra.mxu0 0.0
    %1764 = vmatprep.subr.mxu0 0.0
    %1765 = vmatpush1.msra.mxu0 0.0
    %1766 = vmatprep.subr.mxu0 0.0
    %1767 = vmatpush1.msra.mxu0 0.0
    %1768 = vmatprep.subr.mxu0 0.0
    %1769 = vmatpush1.msra.mxu0 0.0
    %1770 = vmatprep.subr.mxu0 0.0
    %1771 = vmatpush1.msra.mxu0 0.0
    %1772 = vmatprep.subr.mxu0 0.0
    %1773 = vmatpush1.msra.mxu0 0.0
    %1774 = vmatprep.subr.mxu0 0.0
    %1775 = vmatpush1.msra.mxu0 0.0
    %1776 = vmatprep.mubr.f32.mxu0 0.0
    %1777 = vmatmul.mubr.f32.gmra.mrb[0].mxu0 %v1707
    %v1778 = vpop.f32.mrb[0].mxu0
    %v1779 = vadd.f32 %v1705, %v1778
    %v1780 = vpop.f32.mrb[0].mxu0
    %1781 = vmatprep.mubr.f32.mxu0 0.0
    %1782 = vmatmul.mubr.f32.gmra.mrb[0].mxu0 %v1710
    %v1783 = vpop.f32.mrb[0].mxu0
    %v1784 = vadd.f32 %v1705, %v1783
    %v1785 = vpop.f32.mrb[0].mxu0
    %1786 = vdwg.mxu0
    %1787 = vst.msk [vmem:[#allocation11] sm:$0xff] %vm90, %v1779
    %1788 = vst.msk [vmem:[#allocation11 + $0x8] sm:$0xff] %vm90, %v1784
    // Predicated region
    $region42: #{tpu_custom_call.1} parent=1 // pred_check
      _
    $region43: #{tpu_custom_call.1} parent=1 // pred_check_branch
      %1790 = sbr.rel (0) target = $region45
    $region44: #{tpu_custom_call.1} parent=1 // pred_region
      %s1792 = ssub.s32 256, 256
      %1793 = vsyncadd [#allocation4], %s1792
      %s1794 = sshll.u32 [#allocation11], 4
      %s1795 = int_to_ptr.vmem [resolvable:$true] %s1794
      %1800 = dma.vmem_to_hbm [thread:$0]  %s1795, 256, %s5, [#allocation4], 128, 128, 8
    $region45: #{tpu_custom_call.1} parent=1 // pred_fallthru
      _
    // Predicated region
    $region46: #{tpu_custom_call.1} parent=1 // pred_check
      _
    $region47: #{tpu_custom_call.1} parent=1 // pred_check_branch
      %1802 = sbr.rel (0) target = $region49
    $region48: #{tpu_custom_call.1} parent=1 // pred_region
      %1803 = dma.done [#allocation4], 256
    $region49: #{tpu_custom_call.1} parent=1 // pred_fallthru
      _
    %1804 = vsyncpa [#allocation3], 1
    %1805 = vsyncpa [#allocation6], 1
    %1806 = vsyncpa [#allocation9], 1
    %1807 = vsyncpa [#allocation4], 1

</llo_original>
